<compile_context>
chip_gen: v7x
topology: tpu7x:2x2x1
jax: 0.10.0
libtpu: 0.0.40
codegen_flags: <defaults>
</compile_context>

<pallas_src>
import functools

import jax
import jax.numpy as jnp
from jax.experimental import pallas as pl
from jax.experimental.pallas import tpu as pltpu


def _round_up(n, m):
    return ((n + m - 1) // m) * m


def _choose_batch_tiling(B):
    """Pad batch only to a multiple of 8; pick a tile that divides it exactly.

    Cap the tile at 256 rows (fills v6e/v7x 256-wide MXU) and guarantee >= 2
    grid steps whenever B_pad >= 16 so the "parallel" grid axis can be split
    across v7x's two TensorCores.
    """
    align = 8
    b_pad = _round_up(max(B, 1), align)
    if b_pad < 2 * align:
        return b_pad, b_pad                       # single tile, single step
    cap = min(256, max(align, (b_pad // 2) // align * align))
    b_tile = align
    cand = cap
    while cand >= align:
        if b_pad % cand == 0:
            b_tile = cand
            break
        cand -= align
    return b_pad, b_tile


def _vae_fwd_kernel(x_ref, eps_ref,
                    w1_ref, b1_ref,
                    wmv_ref, bmv_ref,
                    wdc_ref, bdc_ref,
                    wd2_ref, b2_ref,
                    slab_ref, xr_ref,
                    *, Z, H_pad, SW):
    # ---- encoder layer 1: bf16 MXU operands, f32 accumulation ---------------
    h = jnp.dot(x_ref[...], w1_ref[...], preferred_element_type=jnp.float32)
    h = jnp.maximum(h + b1_ref[...], 0.0)                        # (Bt, H_pad) f32

    # ---- fused mu|logvar matmul: h @ [Wm | Wv | 0] --------------------------
    hz = jnp.dot(h.astype(jnp.bfloat16), wmv_ref[...],
                 preferred_element_type=jnp.float32) + bmv_ref[...]
    mu = hz[:, :Z]                                               # (Bt, Z)
    lvar = hz[:, Z:2 * Z]                                        # (Bt, Z)

    # ---- reparameterize (f32 elementwise, exp on EUP) -----------------------
    z = mu + jnp.exp(0.5 * lvar) * eps_ref[...]                  # (Bt, Z) f32

    # ---- fused decoder-hidden | classifier matmul: z @ [Wd1 | 0 | Wc | 0] ---
    zdc = jnp.dot(z.astype(jnp.bfloat16), wdc_ref[...],
                  preferred_element_type=jnp.float32) + bdc_ref[...]
    dh = jnp.maximum(zdc[:, :H_pad], 0.0)                        # (Bt, H_pad)
    scores_blk = zdc[:, H_pad:H_pad + SW]                        # (Bt, SW): scores|0

    # ---- decoder output: bf16 MXU, sigmoid = 0.5*(tanh(0.5x)+1) (one EUP op) -
    logits = jnp.dot(dh.astype(jnp.bfloat16), wd2_ref[...],
                     preferred_element_type=jnp.float32) + b2_ref[...]
    xr = 0.5 * (jnp.tanh(0.5 * logits) + 1.0)                    # (Bt, D), in [0,1]

    # ---- packed output slab [mu | logvar | scores | 0]: two partial stores --
    slab_ref[:, :2 * Z] = hz[:, :2 * Z]
    slab_ref[:, 2 * Z:] = scores_blk
    xr_ref[...] = xr.astype(xr_ref.dtype)


def pack_params(params, D):
    """Pad / fuse raw Linear params into lane-dense, MXU-friendly bf16 slabs.

    Called ONCE at model init (hoisted out of the forward path).
    """
    (w1, b1, wm, bm, wv, bv, wd1, bd1, wd2, bd2, wc, bc) = params
    hidden = w1.shape[1]
    Z = wm.shape[1]
    NC = wc.shape[1]

    H_pad = _round_up(hidden, 128)            # padded hidden width
    SLAB = _round_up(2 * Z + NC, 128)         # packed output slab width
    SW = SLAB - 2 * Z                         # scores region width in the slab
    assert SW >= NC
    DC = H_pad + _round_up(SW, 128)           # fused [Wd1 | Wc] output width

    f32, bf16 = jnp.float32, jnp.bfloat16

    # W1: (D, hidden) -> (D, H_pad) bf16 ; zero-padded cols give relu(0)=0.
    w1_p = jnp.zeros((D, H_pad), bf16).at[:, :hidden].set(w1.astype(bf16))
    b1_p = jnp.zeros((1, H_pad), f32).at[:, :hidden].set(b1)

    # Fused [Wm | Wv] : (H_pad, SLAB) bf16; padded rows/cols are zero.
    wmv_p = (jnp.zeros((H_pad, SLAB), bf16)
             .at[:hidden, :Z].set(wm.astype(bf16))
             .at[:hidden, Z:2 * Z].set(wv.astype(bf16)))
    bmv_p = (jnp.zeros((1, SLAB), f32)
             .at[:, :Z].set(bm)
             .at[:, Z:2 * Z].set(bv))

    # Fused [Wd1 | Wc] : (Z, DC) bf16; Wd1 in cols [0,hidden), Wc in [H_pad,H_pad+NC).
    wdc_p = (jnp.zeros((Z, DC), bf16)
             .at[:, :hidden].set(wd1.astype(bf16))
             .at[:, H_pad:H_pad + NC].set(wc.astype(bf16)))
    bdc_p = (jnp.zeros((1, DC), f32)
             .at[:, :hidden].set(bd1)
             .at[:, H_pad:H_pad + NC].set(bc))

    # Wd2: (hidden, D) -> (H_pad, D) bf16 ; padded rows multiply zero dh cols.
    wd2_p = jnp.zeros((H_pad, D), bf16).at[:hidden, :].set(wd2.astype(bf16))
    b2_p = bd2.astype(f32)                    # (1, D)

    packed = (w1_p, b1_p, wmv_p, bmv_p, wdc_p, bdc_p, wd2_p, b2_p)
    meta = dict(hidden=hidden, Z=Z, NC=NC, H_pad=H_pad, SLAB=SLAB, SW=SW, DC=DC)

    # Scaling guard for the fully-VMEM-resident weight design (double-buffered).
    # TODO(synk): if the model is scaled up (hidden >= 2048 or D >= 16K), tile
    # W1/Wd2 along K with an extra "arbitrary" grid axis, or mark the weight
    # BlockSpecs pipeline_mode=pl.Buffered(1); v7x has only 64 MiB VMEM per TC.
    resident_bytes = sum(2 * a.size * a.dtype.itemsize for a in packed)
    assert resident_bytes < 16 * 1024 * 1024, (
        "packed weights too large for fully-VMEM-resident kernel; add K-tiling")

    return packed, meta


def make_vae_forward(params, img_shape):
    """Pack params once, return a jitted fused forward: (x_nchw, eps) -> outputs."""
    C, H, W = img_shape
    D = C * H * W
    packed, meta = pack_params(params, D)
    (w1_p, b1_p, wmv_p, bmv_p, wdc_p, bdc_p, wd2_p, b2_p) = packed
    Z, NC = meta["Z"], meta["NC"]
    H_pad, SLAB, SW = meta["H_pad"], meta["SLAB"], meta["SW"]

    kernel = functools.partial(_vae_fwd_kernel, Z=Z, H_pad=H_pad, SW=SW)

    def full_spec(arr):
        return pl.BlockSpec(arr.shape, lambda i: (0, 0))  # VMEM-resident weights

    def fwd(x_nchw, eps):
        B = x_nchw.shape[0]
        # matches torch x.view(B, -1); bf16 halves the dominant HBM read
        x_flat = x_nchw.reshape(B, D).astype(jnp.bfloat16)
        eps_f = eps.astype(jnp.float32)

        B_pad, B_tile = _choose_batch_tiling(B)
        if B_pad != B:                        # pad only the ragged tail
            x_flat = jnp.pad(x_flat, ((0, B_pad - B), (0, 0)))
            eps_f = jnp.pad(eps_f, ((0, B_pad - B), (0, 0)))

        grid_spec = pltpu.PrefetchScalarGridSpec(
            num_scalar_prefetch=0,
            grid=(B_pad // B_tile,),
            in_specs=[
                pl.BlockSpec((B_tile, D), lambda i: (i, 0)),      # x tile (bf16)
                pl.BlockSpec((B_tile, Z), lambda i: (i, 0)),      # eps tile (f32)
                full_spec(w1_p), full_spec(b1_p),
                full_spec(wmv_p), full_spec(bmv_p),
                full_spec(wdc_p), full_spec(bdc_p),
                full_spec(wd2_p), full_spec(b2_p),
            ],
            out_specs=(
                pl.BlockSpec((B_tile, SLAB), lambda i: (i, 0)),   # mu|logvar|scores
                pl.BlockSpec((B_tile, D), lambda i: (i, 0)),      # x_recon (bf16)
            ),
        )

        slab, xr_flat = pl.pallas_call(
            kernel,
            out_shape=(
                jax.ShapeDtypeStruct((B_pad, SLAB), jnp.float32),
                jax.ShapeDtypeStruct((B_pad, D), jnp.bfloat16),
            ),
            grid_spec=grid_spec,
            compiler_params=pltpu.CompilerParams(
                dimension_semantics=("parallel",),   # batch blocks across TCs (v7x)
                vmem_limit_bytes=32 * 1024 * 1024,
            ),
        )(x_flat, eps_f, w1_p, b1_p, wmv_p, bmv_p, wdc_p, bdc_p, wd2_p, b2_p)

        mu = slab[:B, :Z]
        logvar = slab[:B, Z:2 * Z]
        scores = slab[:B, 2 * Z:2 * Z + NC]
        xr = xr_flat[:B].reshape(B, C, H, W)   # bf16 reconstruction
        return scores, (mu, logvar), xr

    return jax.jit(fwd)


def make_params(key, D, hidden, z_size, num_classes):
    """Deterministic synthetic parameters (PyTorch-Linear-like uniform init)."""
    def linear(k, fan_in, fan_out):
        kw, kb = jax.random.split(k)
        bound = 1.0 / jnp.sqrt(jnp.float32(fan_in))
        w = jax.random.uniform(kw, (fan_in, fan_out), jnp.float32, -bound, bound)
        b = jax.random.uniform(kb, (1, fan_out), jnp.float32, -bound, bound)
        return w, b

    ks = jax.random.split(key, 6)
    w1, b1 = linear(ks[0], D, hidden)
    wm, bm = linear(ks[1], hidden, z_size)
    wv, bv = linear(ks[2], hidden, z_size)
    wd1, bd1 = linear(ks[3], z_size, hidden)
    wd2, bd2 = linear(ks[4], hidden, D)
    wc, bc = linear(ks[5], z_size, num_classes)
    return (w1, b1, wm, bm, wv, bv, wd1, bd1, wd2, bd2, wc, bc)


if __name__ == "__main__":
    # Small shapes consistent with the module's forward: NCHW image input.
    B, C, H, W = 2, 4, 16, 16
    D = C * H * W
    hidden = 32
    z_size = 32
    num_classes = 10

    root = jax.random.PRNGKey(0)
    k_x, k_eps, k_p = jax.random.split(root, 3)

    x = jax.random.normal(k_x, (B, C, H, W), jnp.float32)
    # TODO(synk): reparameterization noise is passed in explicitly (torch RNG
    # semantics have no in-kernel equivalent); could be moved on-chip via
    # pltpu.prng_seed + stateful_normal if the exact noise source is irrelevant.
    eps = jax.random.normal(k_eps, (B, z_size), jnp.float32)
    params = make_params(k_p, D, hidden, z_size, num_classes)

    vae_forward = make_vae_forward(params, (C, H, W))   # packs weights once
    scores, (mu, logvar), xr = vae_forward(x, eps)
    jax.block_until_ready((scores, mu, logvar, xr))

    assert scores.shape == (B, num_classes)
    assert mu.shape == (B, z_size) and logvar.shape == (B, z_size)
    assert xr.shape == (B, C, H, W)
    assert bool(jnp.all(jnp.isfinite(scores)))
    assert bool(jnp.all(jnp.isfinite(mu))) and bool(jnp.all(jnp.isfinite(logvar)))
    assert bool(jnp.all((xr >= 0.0) & (xr <= 1.0)))
    print("KERNEL_OK")
</pallas_src>

<mosaic_0001>
module attributes {stable_mosaic.version = 11 : i64} {
  func.func @_vae_fwd_kernel(%arg0: i32, %arg1: memref<8x1024xbf16, #tpu.memory_space<vmem>>, %arg2: memref<8x32xf32, #tpu.memory_space<vmem>>, %arg3: memref<1024x128xbf16, #tpu.memory_space<vmem>>, %arg4: memref<1x128xf32, #tpu.memory_space<vmem>>, %arg5: memref<128x128xbf16, #tpu.memory_space<vmem>>, %arg6: memref<1x128xf32, #tpu.memory_space<vmem>>, %arg7: memref<32x256xbf16, #tpu.memory_space<vmem>>, %arg8: memref<1x256xf32, #tpu.memory_space<vmem>>, %arg9: memref<128x1024xbf16, #tpu.memory_space<vmem>>, %arg10: memref<1x1024xf32, #tpu.memory_space<vmem>>, %arg11: memref<8x128xf32, #tpu.memory_space<vmem>>, %arg12: memref<8x1024xbf16, #tpu.memory_space<vmem>>) attributes {dimension_semantics = [#tpu.dimension_semantics<parallel>], iteration_bounds = array<i64: 1>, scalar_prefetch = 0 : i64, scratch_operands = 0 : i64, tpu.core_type = #tpu.core_type<tc>, window_params = [{transform_indices = @transform_0, window_bounds = array<i64: 8, 1024>}, {transform_indices = @transform_1, window_bounds = array<i64: 8, 32>}, {pipeline_mode = #tpu.pipeline_mode<synchronous>, transform_indices = @transform_2, window_bounds = array<i64: 1024, 128>}, {pipeline_mode = #tpu.pipeline_mode<synchronous>, transform_indices = @transform_3, window_bounds = array<i64: 1, 128>}, {pipeline_mode = #tpu.pipeline_mode<synchronous>, transform_indices = @transform_4, window_bounds = array<i64: 128, 128>}, {pipeline_mode = #tpu.pipeline_mode<synchronous>, transform_indices = @transform_5, window_bounds = array<i64: 1, 128>}, {pipeline_mode = #tpu.pipeline_mode<synchronous>, transform_indices = @transform_6, window_bounds = array<i64: 32, 256>}, {pipeline_mode = #tpu.pipeline_mode<synchronous>, transform_indices = @transform_7, window_bounds = array<i64: 1, 256>}, {pipeline_mode = #tpu.pipeline_mode<synchronous>, transform_indices = @transform_8, window_bounds = array<i64: 128, 1024>}, {pipeline_mode = #tpu.pipeline_mode<synchronous>, transform_indices = @transform_9, window_bounds = array<i64: 1, 1024>}, {transform_indices = @transform_10, window_bounds = array<i64: 8, 128>}, {transform_indices = @transform_11, window_bounds = array<i64: 8, 1024>}]} {
    %c0 = arith.constant 0 : index
    %c0_0 = arith.constant 0 : index
    %0 = vector.load %arg1[%c0, %c0_0] : memref<8x1024xbf16, #tpu.memory_space<vmem>>, vector<8x1024xbf16>
    %c0_1 = arith.constant 0 : index
    %c0_2 = arith.constant 0 : index
    %1 = vector.load %arg3[%c0_1, %c0_2] : memref<1024x128xbf16, #tpu.memory_space<vmem>>, vector<1024x128xbf16>
    %cst = arith.constant dense<0.000000e+00> : vector<8x128xf32>
    %2 = tpu.matmul %0, %1, %cst {dimension_numbers = #tpu.dot_dimension_numbers<[1], [0], [0], [1], [0, 0, 1, 1], [], []>} : vector<8x1024xbf16>, vector<1024x128xbf16>, vector<8x128xf32> -> vector<8x128xf32>
    %c0_3 = arith.constant 0 : index
    %c0_4 = arith.constant 0 : index
    %3 = vector.load %arg4[%c0_3, %c0_4] : memref<1x128xf32, #tpu.memory_space<vmem>>, vector<1x128xf32>
    %4 = vector.broadcast %3 : vector<1x128xf32> to vector<8x128xf32>
    %5 = arith.addf %2, %4 : vector<8x128xf32>
    %cst_5 = arith.constant 0.000000e+00 : f32
    %6 = vector.broadcast %cst_5 : f32 to vector<8x128xf32>
    %7 = arith.maximumf %5, %6 : vector<8x128xf32>
    %8 = arith.truncf %7 : vector<8x128xf32> to vector<8x128xbf16>
    %c0_6 = arith.constant 0 : index
    %c0_7 = arith.constant 0 : index
    %9 = vector.load %arg5[%c0_6, %c0_7] : memref<128x128xbf16, #tpu.memory_space<vmem>>, vector<128x128xbf16>
    %cst_8 = arith.constant dense<0.000000e+00> : vector<8x128xf32>
    %10 = tpu.matmul %8, %9, %cst_8 {dimension_numbers = #tpu.dot_dimension_numbers<[1], [0], [0], [1], [0, 0, 1, 1], [], []>} : vector<8x128xbf16>, vector<128x128xbf16>, vector<8x128xf32> -> vector<8x128xf32>
    %c0_9 = arith.constant 0 : index
    %c0_10 = arith.constant 0 : index
    %11 = vector.load %arg6[%c0_9, %c0_10] : memref<1x128xf32, #tpu.memory_space<vmem>>, vector<1x128xf32>
    %12 = vector.broadcast %11 : vector<1x128xf32> to vector<8x128xf32>
    %13 = arith.addf %10, %12 : vector<8x128xf32>
    %14 = vector.extract_strided_slice %13 {offsets = [0, 0], sizes = [8, 32], strides = [1, 1]} : vector<8x128xf32> to vector<8x32xf32>
    %15 = vector.extract_strided_slice %13 {offsets = [0, 32], sizes = [8, 32], strides = [1, 1]} : vector<8x128xf32> to vector<8x32xf32>
    %cst_11 = arith.constant 5.000000e-01 : f32
    %16 = vector.broadcast %cst_11 : f32 to vector<8x32xf32>
    %17 = arith.mulf %16, %15 : vector<8x32xf32>
    %18 = math.exp %17 : vector<8x32xf32>
    %c0_12 = arith.constant 0 : index
    %c0_13 = arith.constant 0 : index
    %19 = vector.load %arg2[%c0_12, %c0_13] : memref<8x32xf32, #tpu.memory_space<vmem>>, vector<8x32xf32>
    %20 = arith.mulf %18, %19 : vector<8x32xf32>
    %21 = arith.addf %14, %20 : vector<8x32xf32>
    %22 = arith.truncf %21 : vector<8x32xf32> to vector<8x32xbf16>
    %c0_14 = arith.constant 0 : index
    %c0_15 = arith.constant 0 : index
    %23 = vector.load %arg7[%c0_14, %c0_15] : memref<32x256xbf16, #tpu.memory_space<vmem>>, vector<32x256xbf16>
    %cst_16 = arith.constant dense<0.000000e+00> : vector<8x256xf32>
    %24 = tpu.matmul %22, %23, %cst_16 {dimension_numbers = #tpu.dot_dimension_numbers<[1], [0], [0], [1], [0, 0, 1, 1], [], []>} : vector<8x32xbf16>, vector<32x256xbf16>, vector<8x256xf32> -> vector<8x256xf32>
    %c0_17 = arith.constant 0 : index
    %c0_18 = arith.constant 0 : index
    %25 = vector.load %arg8[%c0_17, %c0_18] : memref<1x256xf32, #tpu.memory_space<vmem>>, vector<1x256xf32>
    %26 = vector.broadcast %25 : vector<1x256xf32> to vector<8x256xf32>
    %27 = arith.addf %24, %26 : vector<8x256xf32>
    %28 = vector.extract_strided_slice %27 {offsets = [0, 0], sizes = [8, 128], strides = [1, 1]} : vector<8x256xf32> to vector<8x128xf32>
    %cst_19 = arith.constant 0.000000e+00 : f32
    %29 = vector.broadcast %cst_19 : f32 to vector<8x128xf32>
    %30 = arith.maximumf %28, %29 : vector<8x128xf32>
    %31 = vector.extract_strided_slice %27 {offsets = [0, 128], sizes = [8, 64], strides = [1, 1]} : vector<8x256xf32> to vector<8x64xf32>
    %32 = arith.truncf %30 : vector<8x128xf32> to vector<8x128xbf16>
    %c0_20 = arith.constant 0 : index
    %c0_21 = arith.constant 0 : index
    %33 = vector.load %arg9[%c0_20, %c0_21] : memref<128x1024xbf16, #tpu.memory_space<vmem>>, vector<128x1024xbf16>
    %cst_22 = arith.constant dense<0.000000e+00> : vector<8x1024xf32>
    %34 = tpu.matmul %32, %33, %cst_22 {dimension_numbers = #tpu.dot_dimension_numbers<[1], [0], [0], [1], [0, 0, 1, 1], [], []>} : vector<8x128xbf16>, vector<128x1024xbf16>, vector<8x1024xf32> -> vector<8x1024xf32>
    %c0_23 = arith.constant 0 : index
    %c0_24 = arith.constant 0 : index
    %35 = vector.load %arg10[%c0_23, %c0_24] : memref<1x1024xf32, #tpu.memory_space<vmem>>, vector<1x1024xf32>
    %36 = vector.broadcast %35 : vector<1x1024xf32> to vector<8x1024xf32>
    %37 = arith.addf %34, %36 : vector<8x1024xf32>
    %cst_25 = arith.constant 5.000000e-01 : f32
    %38 = vector.broadcast %cst_25 : f32 to vector<8x1024xf32>
    %39 = arith.mulf %38, %37 : vector<8x1024xf32>
    %40 = math.tanh %39 : vector<8x1024xf32>
    %cst_26 = arith.constant 1.000000e+00 : f32
    %41 = vector.broadcast %cst_26 : f32 to vector<8x1024xf32>
    %42 = arith.addf %40, %41 : vector<8x1024xf32>
    %cst_27 = arith.constant 5.000000e-01 : f32
    %43 = vector.broadcast %cst_27 : f32 to vector<8x1024xf32>
    %44 = arith.mulf %43, %42 : vector<8x1024xf32>
    %45 = vector.extract_strided_slice %13 {offsets = [0, 0], sizes = [8, 64], strides = [1, 1]} : vector<8x128xf32> to vector<8x64xf32>
    %c0_28 = arith.constant 0 : index
    %c0_29 = arith.constant 0 : index
    %46 = vector.load %arg11[%c0_28, %c0_29] : memref<8x128xf32, #tpu.memory_space<vmem>>, vector<8x64xf32>
    tpu.vector_store %arg11[%c0_28, %c0_29], %45 {strides = array<i32>} : memref<8x128xf32, #tpu.memory_space<vmem>>, vector<8x64xf32>,
    %c0_30 = arith.constant 0 : index
    %c64 = arith.constant 64 : index
    %47 = vector.load %arg11[%c0_30, %c64] : memref<8x128xf32, #tpu.memory_space<vmem>>, vector<8x64xf32>
    tpu.vector_store %arg11[%c0_30, %c64], %31 {strides = array<i32>} : memref<8x128xf32, #tpu.memory_space<vmem>>, vector<8x64xf32>,
    %48 = arith.truncf %44 : vector<8x1024xf32> to vector<8x1024xbf16>
    %c0_31 = arith.constant 0 : index
    %c0_32 = arith.constant 0 : index
    %49 = vector.load %arg12[%c0_31, %c0_32] : memref<8x1024xbf16, #tpu.memory_space<vmem>>, vector<8x1024xbf16>
    tpu.vector_store %arg12[%c0_31, %c0_32], %48 {strides = array<i32>} : memref<8x1024xbf16, #tpu.memory_space<vmem>>, vector<8x1024xbf16>,
    return
  }
  func.func @transform_0(%arg0: i32) -> (i32, i32) {
    %c0_i32 = arith.constant 0 : i32
    %c0_i32_0 = arith.constant 0 : i32
    return %arg0, %c0_i32 : i32, i32
  }
  func.func @transform_1(%arg0: i32) -> (i32, i32) {
    %c0_i32 = arith.constant 0 : i32
    %c0_i32_0 = arith.constant 0 : i32
    return %arg0, %c0_i32 : i32, i32
  }
  func.func @transform_2(%arg0: i32) -> (i32, i32) {
    %c0_i32 = arith.constant 0 : i32
    %c0_i32_0 = arith.constant 0 : i32
    %c0_i32_1 = arith.constant 0 : i32
    return %c0_i32, %c0_i32_0 : i32, i32
  }
  func.func @transform_3(%arg0: i32) -> (i32, i32) {
    %c0_i32 = arith.constant 0 : i32
    %c0_i32_0 = arith.constant 0 : i32
    %c0_i32_1 = arith.constant 0 : i32
    return %c0_i32, %c0_i32_0 : i32, i32
  }
  func.func @transform_4(%arg0: i32) -> (i32, i32) {
    %c0_i32 = arith.constant 0 : i32
    %c0_i32_0 = arith.constant 0 : i32
    %c0_i32_1 = arith.constant 0 : i32
    return %c0_i32, %c0_i32_0 : i32, i32
  }
  func.func @transform_5(%arg0: i32) -> (i32, i32) {
    %c0_i32 = arith.constant 0 : i32
    %c0_i32_0 = arith.constant 0 : i32
    %c0_i32_1 = arith.constant 0 : i32
    return %c0_i32, %c0_i32_0 : i32, i32
  }
  func.func @transform_6(%arg0: i32) -> (i32, i32) {
    %c0_i32 = arith.constant 0 : i32
    %c0_i32_0 = arith.constant 0 : i32
    %c0_i32_1 = arith.constant 0 : i32
    return %c0_i32, %c0_i32_0 : i32, i32
  }
  func.func @transform_7(%arg0: i32) -> (i32, i32) {
    %c0_i32 = arith.constant 0 : i32
    %c0_i32_0 = arith.constant 0 : i32
    %c0_i32_1 = arith.constant 0 : i32
    return %c0_i32, %c0_i32_0 : i32, i32
  }
  func.func @transform_8(%arg0: i32) -> (i32, i32) {
    %c0_i32 = arith.constant 0 : i32
    %c0_i32_0 = arith.constant 0 : i32
    %c0_i32_1 = arith.constant 0 : i32
    return %c0_i32, %c0_i32_0 : i32, i32
  }
  func.func @transform_9(%arg0: i32) -> (i32, i32) {
    %c0_i32 = arith.constant 0 : i32
    %c0_i32_0 = arith.constant 0 : i32
    %c0_i32_1 = arith.constant 0 : i32
    return %c0_i32, %c0_i32_0 : i32, i32
  }
  func.func @transform_10(%arg0: i32) -> (i32, i32) {
    %c0_i32 = arith.constant 0 : i32
    %c0_i32_0 = arith.constant 0 : i32
    return %arg0, %c0_i32 : i32, i32
  }
  func.func @transform_11(%arg0: i32) -> (i32, i32) {
    %c0_i32 = arith.constant 0 : i32
    %c0_i32_0 = arith.constant 0 : i32
    return %arg0, %c0_i32 : i32, i32
  }
}

</mosaic_0001>

<llo_original>
// kernel: fwd.1
$region0: #{fwd.1}
  #allocation0 [shape = 'u32[]', space=smem, size = 0x4, offset = 0x4, fixed_abs, tag = 'smem constant byte address 0x4 - core index']
  #allocation1 [shape = 'u32[144,128]{1,0:T(1,128)}', space=vmem, size = 0x12000, scoped, tag = 'internal scratch']
  %s0 = inlined_call_operand.vmem [shape: bf16[8,1024], index: 0, kind: input, shape index: {}]
  %s1 = inlined_call_operand.vmem [shape: f32[8,32], index: 1, kind: input, shape index: {}]
  %s2 = inlined_call_operand.vmem [shape: bf16[1024,128], index: 2, kind: input, shape index: {}]
  %s3 = inlined_call_operand.vmem [shape: f32[1,128], index: 3, kind: input, shape index: {}]
  %s4 = inlined_call_operand.vmem [shape: bf16[128,128], index: 4, kind: input, shape index: {}]
  %s5 = inlined_call_operand.vmem [shape: f32[1,128], index: 5, kind: input, shape index: {}]
  %s6 = inlined_call_operand.vmem [shape: bf16[32,256], index: 6, kind: input, shape index: {}]
  %s7 = inlined_call_operand.vmem [shape: f32[1,256], index: 7, kind: input, shape index: {}]
  %s8 = inlined_call_operand.vmem [shape: bf16[128,1024], index: 8, kind: input, shape index: {}]
  %s9 = inlined_call_operand.vmem [shape: f32[1,1024], index: 9, kind: input, shape index: {}]
  %s10 = inlined_call_operand.vmem [shape: f32[8,128], index: 10, kind: output, shape index: {0}]
  %s11 = inlined_call_operand.vmem [shape: bf16[8,1024], index: 11, kind: output, shape index: {1}]
  %12 = xla_tuple %s10, %s11
  %s13 = sld [smem:[#allocation0]]
  $region58: #{fwd.1} parent=0
    _
  %s15 = ssub.s32 1, %s13
  %s16 = scalar_select 0, %s15, %s13
  // Predicated region
  $region2: #{fwd.1} parent=0 // pred_check
    _
  $region3: #{fwd.1} parent=0 // pred_check_branch
    %18 = sbr.rel (0) target = $region5
  $region4: #{fwd.1} parent=0 // pred_region
    _
  $region5: #{fwd.1} parent=0 // pred_fallthru
    _
  // Predicated region
  $region6: #{fwd.1} parent=0 // pred_check
    _
  $region7: #{fwd.1} parent=0 // pred_check_branch
    %20 = sbr.rel (0) target = $region9
  $region8: #{fwd.1} parent=0 // pred_region
    _
  $region9: #{fwd.1} parent=0 // pred_fallthru
    _
  // Predicated region
  $region10: #{fwd.1} parent=0 // pred_check
    _
  $region11: #{fwd.1} parent=0 // pred_check_branch
    %22 = sbr.rel (0) target = $region13
  $region12: #{fwd.1} parent=0 // pred_region
    _
  $region13: #{fwd.1} parent=0 // pred_fallthru
    _
  // Predicated region
  $region14: #{fwd.1} parent=0 // pred_check
    _
  $region15: #{fwd.1} parent=0 // pred_check_branch
    %24 = sbr.rel (0) target = $region17
  $region16: #{fwd.1} parent=0 // pred_region
    _
  $region17: #{fwd.1} parent=0 // pred_fallthru
    _
  // Predicated region
  $region18: #{fwd.1} parent=0 // pred_check
    _
  $region19: #{fwd.1} parent=0 // pred_check_branch
    %26 = sbr.rel (0) target = $region21
  $region20: #{fwd.1} parent=0 // pred_region
    _
  $region21: #{fwd.1} parent=0 // pred_fallthru
    _
  // Predicated region
  $region22: #{fwd.1} parent=0 // pred_check
    _
  $region23: #{fwd.1} parent=0 // pred_check_branch
    %28 = sbr.rel (0) target = $region25
  $region24: #{fwd.1} parent=0 // pred_region
    _
  $region25: #{fwd.1} parent=0 // pred_fallthru
    _
  // Predicated region
  $region26: #{fwd.1} parent=0 // pred_check
    _
  $region27: #{fwd.1} parent=0 // pred_check_branch
    %30 = sbr.rel (0) target = $region29
  $region28: #{fwd.1} parent=0 // pred_region
    _
  $region29: #{fwd.1} parent=0 // pred_fallthru
    _
  // Predicated region
  $region30: #{fwd.1} parent=0 // pred_check
    _
  $region31: #{fwd.1} parent=0 // pred_check_branch
    %32 = sbr.rel (0) target = $region33
  $region32: #{fwd.1} parent=0 // pred_region
    _
  $region33: #{fwd.1} parent=0 // pred_fallthru
    _
  // Predicated region
  $region34: #{fwd.1} parent=0 // pred_check
    _
  $region35: #{fwd.1} parent=0 // pred_check_branch
    %34 = sbr.rel (0) target = $region37
  $region36: #{fwd.1} parent=0 // pred_region
    _
  $region37: #{fwd.1} parent=0 // pred_fallthru
    _
  // Predicated region
  $region38: #{fwd.1} parent=0 // pred_check
    _
  $region39: #{fwd.1} parent=0 // pred_check_branch
    %36 = sbr.rel (0) target = $region41
  $region40: #{fwd.1} parent=0 // pred_region
    _
  $region41: #{fwd.1} parent=0 // pred_fallthru
    _
  %v38 = vld [vmem:[%s0] sm:$0xff]
  %v39 = vld [vmem:[%s0 + $0x8] sm:$0xff]
  %v40 = vld [vmem:[%s0 + $0x10] sm:$0xff]
  %v41 = vld [vmem:[%s0 + $0x18] sm:$0xff]
  %v42 = vld [vmem:[%s2] sm:$0xf]
  %v43 = vld [vmem:[%s2 + $0x4] sm:$0xf]
  %v44 = vld [vmem:[%s2 + $0x8] sm:$0xf]
  %v45 = vld [vmem:[%s2 + $0xc] sm:$0xf]
  %v46 = vld [vmem:[%s2 + $0x10] sm:$0xf]
  %v47 = vld [vmem:[%s2 + $0x14] sm:$0xf]
  %v48 = vld [vmem:[%s2 + $0x18] sm:$0xf]
  %v49 = vld [vmem:[%s2 + $0x1c] sm:$0xf]
  %v50 = vld [vmem:[%s2 + $0x20] sm:$0xf]
  %v51 = vld [vmem:[%s2 + $0x24] sm:$0xf]
  %v52 = vld [vmem:[%s2 + $0x28] sm:$0xf]
  %v53 = vld [vmem:[%s2 + $0x2c] sm:$0xf]
  %v54 = vld [vmem:[%s2 + $0x30] sm:$0xf]
  %v55 = vld [vmem:[%s2 + $0x34] sm:$0xf]
  %v56 = vld [vmem:[%s2 + $0x38] sm:$0xf]
  %v57 = vld [vmem:[%s2 + $0x3c] sm:$0xf]
  %v58 = vld [vmem:[%s2 + $0x40] sm:$0xf]
  %v59 = vld [vmem:[%s2 + $0x44] sm:$0xf]
  %v60 = vld [vmem:[%s2 + $0x48] sm:$0xf]
  %v61 = vld [vmem:[%s2 + $0x4c] sm:$0xf]
  %v62 = vld [vmem:[%s2 + $0x50] sm:$0xf]
  %v63 = vld [vmem:[%s2 + $0x54] sm:$0xf]
  %v64 = vld [vmem:[%s2 + $0x58] sm:$0xf]
  %v65 = vld [vmem:[%s2 + $0x5c] sm:$0xf]
  %v66 = vld [vmem:[%s2 + $0x60] sm:$0xf]
  %v67 = vld [vmem:[%s2 + $0x64] sm:$0xf]
  %v68 = vld [vmem:[%s2 + $0x68] sm:$0xf]
  %v69 = vld [vmem:[%s2 + $0x6c] sm:$0xf]
  %v70 = vld [vmem:[%s2 + $0x70] sm:$0xf]
  %v71 = vld [vmem:[%s2 + $0x74] sm:$0xf]
  %v72 = vld [vmem:[%s2 + $0x78] sm:$0xf]
  %v73 = vld [vmem:[%s2 + $0x7c] sm:$0xf]
  %v74 = vld [vmem:[%s2 + $0x80] sm:$0xf]
  %v75 = vld [vmem:[%s2 + $0x84] sm:$0xf]
  %v76 = vld [vmem:[%s2 + $0x88] sm:$0xf]
  %v77 = vld [vmem:[%s2 + $0x8c] sm:$0xf]
  %v78 = vld [vmem:[%s2 + $0x90] sm:$0xf]
  %v79 = vld [vmem:[%s2 + $0x94] sm:$0xf]
  %v80 = vld [vmem:[%s2 + $0x98] sm:$0xf]
  %v81 = vld [vmem:[%s2 + $0x9c] sm:$0xf]
  %v82 = vld [vmem:[%s2 + $0xa0] sm:$0xf]
  %v83 = vld [vmem:[%s2 + $0xa4] sm:$0xf]
  %v84 = vld [vmem:[%s2 + $0xa8] sm:$0xf]
  %v85 = vld [vmem:[%s2 + $0xac] sm:$0xf]
  %v86 = vld [vmem:[%s2 + $0xb0] sm:$0xf]
  %v87 = vld [vmem:[%s2 + $0xb4] sm:$0xf]
  %v88 = vld [vmem:[%s2 + $0xb8] sm:$0xf]
  %v89 = vld [vmem:[%s2 + $0xbc] sm:$0xf]
  %v90 = vld [vmem:[%s2 + $0xc0] sm:$0xf]
  %v91 = vld [vmem:[%s2 + $0xc4] sm:$0xf]
  %v92 = vld [vmem:[%s2 + $0xc8] sm:$0xf]
  %v93 = vld [vmem:[%s2 + $0xcc] sm:$0xf]
  %v94 = vld [vmem:[%s2 + $0xd0] sm:$0xf]
  %v95 = vld [vmem:[%s2 + $0xd4] sm:$0xf]
  %v96 = vld [vmem:[%s2 + $0xd8] sm:$0xf]
  %v97 = vld [vmem:[%s2 + $0xdc] sm:$0xf]
  %v98 = vld [vmem:[%s2 + $0xe0] sm:$0xf]
  %v99 = vld [vmem:[%s2 + $0xe4] sm:$0xf]
  %v100 = vld [vmem:[%s2 + $0xe8] sm:$0xf]
  %v101 = vld [vmem:[%s2 + $0xec] sm:$0xf]
  %v102 = vld [vmem:[%s2 + $0xf0] sm:$0xf]
  %v103 = vld [vmem:[%s2 + $0xf4] sm:$0xf]
  %v104 = vld [vmem:[%s2 + $0xf8] sm:$0xf]
  %v105 = vld [vmem:[%s2 + $0xfc] sm:$0xf]
  %v106 = vld [vmem:[%s2 + $0x100] sm:$0xf]
  %v107 = vld [vmem:[%s2 + $0x104] sm:$0xf]
  %v108 = vld [vmem:[%s2 + $0x108] sm:$0xf]
  %v109 = vld [vmem:[%s2 + $0x10c] sm:$0xf]
  %v110 = vld [vmem:[%s2 + $0x110] sm:$0xf]
  %v111 = vld [vmem:[%s2 + $0x114] sm:$0xf]
  %v112 = vld [vmem:[%s2 + $0x118] sm:$0xf]
  %v113 = vld [vmem:[%s2 + $0x11c] sm:$0xf]
  %v114 = vld [vmem:[%s2 + $0x120] sm:$0xf]
  %v115 = vld [vmem:[%s2 + $0x124] sm:$0xf]
  %v116 = vld [vmem:[%s2 + $0x128] sm:$0xf]
  %v117 = vld [vmem:[%s2 + $0x12c] sm:$0xf]
  %v118 = vld [vmem:[%s2 + $0x130] sm:$0xf]
  %v119 = vld [vmem:[%s2 + $0x134] sm:$0xf]
  %v120 = vld [vmem:[%s2 + $0x138] sm:$0xf]
  %v121 = vld [vmem:[%s2 + $0x13c] sm:$0xf]
  %v122 = vld [vmem:[%s2 + $0x140] sm:$0xf]
  %v123 = vld [vmem:[%s2 + $0x144] sm:$0xf]
  %v124 = vld [vmem:[%s2 + $0x148] sm:$0xf]
  %v125 = vld [vmem:[%s2 + $0x14c] sm:$0xf]
  %v126 = vld [vmem:[%s2 + $0x150] sm:$0xf]
  %v127 = vld [vmem:[%s2 + $0x154] sm:$0xf]
  %v128 = vld [vmem:[%s2 + $0x158] sm:$0xf]
  %v129 = vld [vmem:[%s2 + $0x15c] sm:$0xf]
  %v130 = vld [vmem:[%s2 + $0x160] sm:$0xf]
  %v131 = vld [vmem:[%s2 + $0x164] sm:$0xf]
  %v132 = vld [vmem:[%s2 + $0x168] sm:$0xf]
  %v133 = vld [vmem:[%s2 + $0x16c] sm:$0xf]
  %v134 = vld [vmem:[%s2 + $0x170] sm:$0xf]
  %v135 = vld [vmem:[%s2 + $0x174] sm:$0xf]
  %v136 = vld [vmem:[%s2 + $0x178] sm:$0xf]
  %v137 = vld [vmem:[%s2 + $0x17c] sm:$0xf]
  %v138 = vld [vmem:[%s2 + $0x180] sm:$0xf]
  %v139 = vld [vmem:[%s2 + $0x184] sm:$0xf]
  %v140 = vld [vmem:[%s2 + $0x188] sm:$0xf]
  %v141 = vld [vmem:[%s2 + $0x18c] sm:$0xf]
  %v142 = vld [vmem:[%s2 + $0x190] sm:$0xf]
  %v143 = vld [vmem:[%s2 + $0x194] sm:$0xf]
  %v144 = vld [vmem:[%s2 + $0x198] sm:$0xf]
  %v145 = vld [vmem:[%s2 + $0x19c] sm:$0xf]
  %v146 = vld [vmem:[%s2 + $0x1a0] sm:$0xf]
  %v147 = vld [vmem:[%s2 + $0x1a4] sm:$0xf]
  %v148 = vld [vmem:[%s2 + $0x1a8] sm:$0xf]
  %v149 = vld [vmem:[%s2 + $0x1ac] sm:$0xf]
  %v150 = vld [vmem:[%s2 + $0x1b0] sm:$0xf]
  %v151 = vld [vmem:[%s2 + $0x1b4] sm:$0xf]
  %v152 = vld [vmem:[%s2 + $0x1b8] sm:$0xf]
  %v153 = vld [vmem:[%s2 + $0x1bc] sm:$0xf]
  %v154 = vld [vmem:[%s2 + $0x1c0] sm:$0xf]
  %v155 = vld [vmem:[%s2 + $0x1c4] sm:$0xf]
  %v156 = vld [vmem:[%s2 + $0x1c8] sm:$0xf]
  %v157 = vld [vmem:[%s2 + $0x1cc] sm:$0xf]
  %v158 = vld [vmem:[%s2 + $0x1d0] sm:$0xf]
  %v159 = vld [vmem:[%s2 + $0x1d4] sm:$0xf]
  %v160 = vld [vmem:[%s2 + $0x1d8] sm:$0xf]
  %v161 = vld [vmem:[%s2 + $0x1dc] sm:$0xf]
  %v162 = vld [vmem:[%s2 + $0x1e0] sm:$0xf]
  %v163 = vld [vmem:[%s2 + $0x1e4] sm:$0xf]
  %v164 = vld [vmem:[%s2 + $0x1e8] sm:$0xf]
  %v165 = vld [vmem:[%s2 + $0x1ec] sm:$0xf]
  %v166 = vld [vmem:[%s2 + $0x1f0] sm:$0xf]
  %v167 = vld [vmem:[%s2 + $0x1f4] sm:$0xf]
  %v168 = vld [vmem:[%s2 + $0x1f8] sm:$0xf]
  %v169 = vld [vmem:[%s2 + $0x1fc] sm:$0xf]
  %v170 = vld [vmem:[%s3] sm:$0x1]
  %v172 = vlaneseq
  %v173 = vshrl.u32 %v172, 7
  %v174 = vsub.s32 0, %v173
  %v175 = vrot.slane %v170, %v174
  %v181 = vunpack.c.l.b16 %v38
  %v182 = vunpack.c.h.b16 %v38
  %v183 = vunpack.c.l.b16 %v39
  %v184 = vunpack.c.h.b16 %v39
  %v185 = vunpack.c.l.b16 %v40
  %v186 = vunpack.c.h.b16 %v40
  %v187 = vunpack.c.l.b16 %v41
  %v188 = vunpack.c.h.b16 %v41
  %v189 = vpack.c.b16 %v181, %v181
  %v190 = vpack.c.b16 %v182, %v182
  %v191 = vpack.c.b16 %v183, %v183
  %v192 = vpack.c.b16 %v184, %v184
  %v193 = vpack.c.b16 %v185, %v185
  %v194 = vpack.c.b16 %v186, %v186
  %v195 = vpack.c.b16 %v187, %v187
  %v196 = vpack.c.b16 %v188, %v188
  %v333 = vunpack.c.l.b16 %v42
  %v334 = vunpack.c.l.b16 %v43
  %v335 = vunpack.c.l.b16 %v44
  %v336 = vunpack.c.l.b16 %v45
  %v337 = vunpack.c.l.b16 %v46
  %v338 = vunpack.c.l.b16 %v47
  %v339 = vunpack.c.l.b16 %v48
  %v340 = vunpack.c.l.b16 %v49
  %v341 = vunpack.c.l.b16 %v50
  %v342 = vunpack.c.l.b16 %v51
  %v343 = vunpack.c.l.b16 %v52
  %v344 = vunpack.c.l.b16 %v53
  %v345 = vunpack.c.l.b16 %v54
  %v346 = vunpack.c.l.b16 %v55
  %v347 = vunpack.c.l.b16 %v56
  %v348 = vunpack.c.l.b16 %v57
  %v349 = vunpack.c.l.b16 %v58
  %v350 = vunpack.c.l.b16 %v59
  %v351 = vunpack.c.l.b16 %v60
  %v352 = vunpack.c.l.b16 %v61
  %v353 = vunpack.c.l.b16 %v62
  %v354 = vunpack.c.l.b16 %v63
  %v355 = vunpack.c.l.b16 %v64
  %v356 = vunpack.c.l.b16 %v65
  %v357 = vunpack.c.l.b16 %v66
  %v358 = vunpack.c.l.b16 %v67
  %v359 = vunpack.c.l.b16 %v68
  %v360 = vunpack.c.l.b16 %v69
  %v361 = vunpack.c.l.b16 %v70
  %v362 = vunpack.c.l.b16 %v71
  %v363 = vunpack.c.l.b16 %v72
  %v364 = vunpack.c.l.b16 %v73
  %v365 = vunpack.c.l.b16 %v74
  %v366 = vunpack.c.l.b16 %v75
  %v367 = vunpack.c.l.b16 %v76
  %v368 = vunpack.c.l.b16 %v77
  %v369 = vunpack.c.l.b16 %v78
  %v370 = vunpack.c.l.b16 %v79
  %v371 = vunpack.c.l.b16 %v80
  %v372 = vunpack.c.l.b16 %v81
  %v373 = vunpack.c.l.b16 %v82
  %v374 = vunpack.c.l.b16 %v83
  %v375 = vunpack.c.l.b16 %v84
  %v376 = vunpack.c.l.b16 %v85
  %v377 = vunpack.c.l.b16 %v86
  %v378 = vunpack.c.l.b16 %v87
  %v379 = vunpack.c.l.b16 %v88
  %v380 = vunpack.c.l.b16 %v89
  %v381 = vunpack.c.l.b16 %v90
  %v382 = vunpack.c.l.b16 %v91
  %v383 = vunpack.c.l.b16 %v92
  %v384 = vunpack.c.l.b16 %v93
  %v385 = vunpack.c.l.b16 %v94
  %v386 = vunpack.c.l.b16 %v95
  %v387 = vunpack.c.l.b16 %v96
  %v388 = vunpack.c.l.b16 %v97
  %v389 = vunpack.c.l.b16 %v98
  %v390 = vunpack.c.l.b16 %v99
  %v391 = vunpack.c.l.b16 %v100
  %v392 = vunpack.c.l.b16 %v101
  %v393 = vunpack.c.l.b16 %v102
  %v394 = vunpack.c.l.b16 %v103
  %v395 = vunpack.c.l.b16 %v104
  %v396 = vunpack.c.l.b16 %v105
  %v397 = vunpack.c.l.b16 %v106
  %v398 = vunpack.c.l.b16 %v107
  %v399 = vunpack.c.l.b16 %v108
  %v400 = vunpack.c.l.b16 %v109
  %v401 = vunpack.c.l.b16 %v110
  %v402 = vunpack.c.l.b16 %v111
  %v403 = vunpack.c.l.b16 %v112
  %v404 = vunpack.c.l.b16 %v113
  %v405 = vunpack.c.l.b16 %v114
  %v406 = vunpack.c.l.b16 %v115
  %v407 = vunpack.c.l.b16 %v116
  %v408 = vunpack.c.l.b16 %v117
  %v409 = vunpack.c.l.b16 %v118
  %v410 = vunpack.c.l.b16 %v119
  %v411 = vunpack.c.l.b16 %v120
  %v412 = vunpack.c.l.b16 %v121
  %v413 = vunpack.c.l.b16 %v122
  %v414 = vunpack.c.l.b16 %v123
  %v415 = vunpack.c.l.b16 %v124
  %v416 = vunpack.c.l.b16 %v125
  %v417 = vunpack.c.l.b16 %v126
  %v418 = vunpack.c.l.b16 %v127
  %v419 = vunpack.c.l.b16 %v128
  %v420 = vunpack.c.l.b16 %v129
  %v421 = vunpack.c.l.b16 %v130
  %v422 = vunpack.c.l.b16 %v131
  %v423 = vunpack.c.l.b16 %v132
  %v424 = vunpack.c.l.b16 %v133
  %v425 = vunpack.c.l.b16 %v134
  %v426 = vunpack.c.l.b16 %v135
  %v427 = vunpack.c.l.b16 %v136
  %v428 = vunpack.c.l.b16 %v137
  %v429 = vunpack.c.l.b16 %v138
  %v430 = vunpack.c.l.b16 %v139
  %v431 = vunpack.c.l.b16 %v140
  %v432 = vunpack.c.l.b16 %v141
  %v433 = vunpack.c.l.b16 %v142
  %v434 = vunpack.c.l.b16 %v143
  %v435 = vunpack.c.l.b16 %v144
  %v436 = vunpack.c.l.b16 %v145
  %v437 = vunpack.c.l.b16 %v146
  %v438 = vunpack.c.l.b16 %v147
  %v439 = vunpack.c.l.b16 %v148
  %v440 = vunpack.c.l.b16 %v149
  %v441 = vunpack.c.l.b16 %v150
  %v442 = vunpack.c.l.b16 %v151
  %v443 = vunpack.c.l.b16 %v152
  %v444 = vunpack.c.l.b16 %v153
  %v445 = vunpack.c.l.b16 %v154
  %v446 = vunpack.c.l.b16 %v155
  %v447 = vunpack.c.l.b16 %v156
  %v448 = vunpack.c.l.b16 %v157
  %v449 = vunpack.c.l.b16 %v158
  %v450 = vunpack.c.l.b16 %v159
  %v451 = vunpack.c.l.b16 %v160
  %v452 = vunpack.c.l.b16 %v161
  %v453 = vunpack.c.l.b16 %v162
  %v454 = vunpack.c.l.b16 %v163
  %v455 = vunpack.c.l.b16 %v164
  %v456 = vunpack.c.l.b16 %v165
  %v457 = vunpack.c.l.b16 %v166
  %v458 = vunpack.c.l.b16 %v167
  %v459 = vunpack.c.l.b16 %v168
  %v460 = vunpack.c.l.b16 %v169
  %v461 = vpack.c.b16 %v334, %v333
  %v462 = vpack.c.b16 %v336, %v335
  %v463 = vpack.c.b16 %v338, %v337
  %v464 = vpack.c.b16 %v340, %v339
  %v465 = vpack.c.b16 %v342, %v341
  %v466 = vpack.c.b16 %v344, %v343
  %v467 = vpack.c.b16 %v346, %v345
  %v468 = vpack.c.b16 %v348, %v347
  %v469 = vpack.c.b16 %v350, %v349
  %v470 = vpack.c.b16 %v352, %v351
  %v471 = vpack.c.b16 %v354, %v353
  %v472 = vpack.c.b16 %v356, %v355
  %v473 = vpack.c.b16 %v358, %v357
  %v474 = vpack.c.b16 %v360, %v359
  %v475 = vpack.c.b16 %v362, %v361
  %v476 = vpack.c.b16 %v364, %v363
  %v477 = vpack.c.b16 %v366, %v365
  %v478 = vpack.c.b16 %v368, %v367
  %v479 = vpack.c.b16 %v370, %v369
  %v480 = vpack.c.b16 %v372, %v371
  %v481 = vpack.c.b16 %v374, %v373
  %v482 = vpack.c.b16 %v376, %v375
  %v483 = vpack.c.b16 %v378, %v377
  %v484 = vpack.c.b16 %v380, %v379
  %v485 = vpack.c.b16 %v382, %v381
  %v486 = vpack.c.b16 %v384, %v383
  %v487 = vpack.c.b16 %v386, %v385
  %v488 = vpack.c.b16 %v388, %v387
  %v489 = vpack.c.b16 %v390, %v389
  %v490 = vpack.c.b16 %v392, %v391
  %v491 = vpack.c.b16 %v394, %v393
  %v492 = vpack.c.b16 %v396, %v395
  %v493 = vpack.c.b16 %v398, %v397
  %v494 = vpack.c.b16 %v400, %v399
  %v495 = vpack.c.b16 %v402, %v401
  %v496 = vpack.c.b16 %v404, %v403
  %v497 = vpack.c.b16 %v406, %v405
  %v498 = vpack.c.b16 %v408, %v407
  %v499 = vpack.c.b16 %v410, %v409
  %v500 = vpack.c.b16 %v412, %v411
  %v501 = vpack.c.b16 %v414, %v413
  %v502 = vpack.c.b16 %v416, %v415
  %v503 = vpack.c.b16 %v418, %v417
  %v504 = vpack.c.b16 %v420, %v419
  %v505 = vpack.c.b16 %v422, %v421
  %v506 = vpack.c.b16 %v424, %v423
  %v507 = vpack.c.b16 %v426, %v425
  %v508 = vpack.c.b16 %v428, %v427
  %v509 = vpack.c.b16 %v430, %v429
  %v510 = vpack.c.b16 %v432, %v431
  %v511 = vpack.c.b16 %v434, %v433
  %v512 = vpack.c.b16 %v436, %v435
  %v513 = vpack.c.b16 %v438, %v437
  %v514 = vpack.c.b16 %v440, %v439
  %v515 = vpack.c.b16 %v442, %v441
  %v516 = vpack.c.b16 %v444, %v443
  %v517 = vpack.c.b16 %v446, %v445
  %v518 = vpack.c.b16 %v448, %v447
  %v519 = vpack.c.b16 %v450, %v449
  %v520 = vpack.c.b16 %v452, %v451
  %v521 = vpack.c.b16 %v454, %v453
  %v522 = vpack.c.b16 %v456, %v455
  %v523 = vpack.c.b16 %v458, %v457
  %v524 = vpack.c.b16 %v460, %v459
  %589 = vmatprep.subr.bf16.mxu0 0
  %590 = vmatpush1.bf16.msra.mxu0 %v461
  %591 = vmatprep.subr.bf16.mxu0 0
  %592 = vmatpush1.bf16.msra.mxu0 %v462
  %593 = vmatprep.subr.bf16.mxu0 0
  %594 = vmatpush1.bf16.msra.mxu0 %v463
  %595 = vmatprep.subr.bf16.mxu0 0
  %596 = vmatpush1.bf16.msra.mxu0 %v464
  %597 = vmatprep.subr.bf16.mxu0 0
  %598 = vmatpush1.bf16.msra.mxu0 %v465
  %599 = vmatprep.subr.bf16.mxu0 0
  %600 = vmatpush1.bf16.msra.mxu0 %v466
  %601 = vmatprep.subr.bf16.mxu0 0
  %602 = vmatpush1.bf16.msra.mxu0 %v467
  %603 = vmatprep.subr.bf16.mxu0 0
  %604 = vmatpush1.bf16.msra.mxu0 %v468
  %605 = vmatprep.subr.bf16.mxu0 0
  %606 = vmatpush1.bf16.msra.mxu0 %v469
  %607 = vmatprep.subr.bf16.mxu0 0
  %608 = vmatpush1.bf16.msra.mxu0 %v470
  %609 = vmatprep.subr.bf16.mxu0 0
  %610 = vmatpush1.bf16.msra.mxu0 %v471
  %611 = vmatprep.subr.bf16.mxu0 0
  %612 = vmatpush1.bf16.msra.mxu0 %v472
  %613 = vmatprep.subr.bf16.mxu0 0
  %614 = vmatpush1.bf16.msra.mxu0 %v473
  %615 = vmatprep.subr.bf16.mxu0 0
  %616 = vmatpush1.bf16.msra.mxu0 %v474
  %617 = vmatprep.subr.bf16.mxu0 0
  %618 = vmatpush1.bf16.msra.mxu0 %v475
  %619 = vmatprep.subr.bf16.mxu0 0
  %620 = vmatpush1.bf16.msra.mxu0 %v476
  %621 = vmatprep.mubr.bf16.mxu0 %v190
  %622 = vmatmul.mubr.bf16.gmra.mrb[0].mxu0 %v189
  %v623 = vpop.f32.mrb[0].mxu0
  %v624 = vadd.f32 %v175, %v623
  %v625 = vpop.f32.mrb[0].mxu0
  %v626 = vpop.f32.mrb[0].mxu0
  %v627 = vpop.f32.mrb[0].mxu0
  %628 = vdwg.mxu0
  %629 = vmatprep.subr.bf16.mxu0 0
  %630 = vmatpush1.bf16.msra.mxu0 %v477
  %631 = vmatprep.subr.bf16.mxu0 0
  %632 = vmatpush1.bf16.msra.mxu0 %v478
  %633 = vmatprep.subr.bf16.mxu0 0
  %634 = vmatpush1.bf16.msra.mxu0 %v479
  %635 = vmatprep.subr.bf16.mxu0 0
  %636 = vmatpush1.bf16.msra.mxu0 %v480
  %637 = vmatprep.subr.bf16.mxu0 0
  %638 = vmatpush1.bf16.msra.mxu0 %v481
  %639 = vmatprep.subr.bf16.mxu0 0
  %640 = vmatpush1.bf16.msra.mxu0 %v482
  %641 = vmatprep.subr.bf16.mxu0 0
  %642 = vmatpush1.bf16.msra.mxu0 %v483
  %643 = vmatprep.subr.bf16.mxu0 0
  %644 = vmatpush1.bf16.msra.mxu0 %v484
  %645 = vmatprep.subr.bf16.mxu0 0
  %646 = vmatpush1.bf16.msra.mxu0 %v485
  %647 = vmatprep.subr.bf16.mxu0 0
  %648 = vmatpush1.bf16.msra.mxu0 %v486
  %649 = vmatprep.subr.bf16.mxu0 0
  %650 = vmatpush1.bf16.msra.mxu0 %v487
  %651 = vmatprep.subr.bf16.mxu0 0
  %652 = vmatpush1.bf16.msra.mxu0 %v488
  %653 = vmatprep.subr.bf16.mxu0 0
  %654 = vmatpush1.bf16.msra.mxu0 %v489
  %655 = vmatprep.subr.bf16.mxu0 0
  %656 = vmatpush1.bf16.msra.mxu0 %v490
  %657 = vmatprep.subr.bf16.mxu0 0
  %658 = vmatpush1.bf16.msra.mxu0 %v491
  %659 = vmatprep.subr.bf16.mxu0 0
  %660 = vmatpush1.bf16.msra.mxu0 %v492
  %661 = vmatprep.mubr.bf16.mxu0 %v192
  %662 = vmatmul.mubr.bf16.gmra.mrb[0].mxu0 %v191
  %v663 = vpop.f32.mrb[0].mxu0
  %v664 = vadd.f32 %v624, %v663
  %v665 = vpop.f32.mrb[0].mxu0
  %v666 = vpop.f32.mrb[0].mxu0
  %v667 = vpop.f32.mrb[0].mxu0
  %668 = vdwg.mxu0
  %669 = vmatprep.subr.bf16.mxu0 0
  %670 = vmatpush1.bf16.msra.mxu0 %v493
  %671 = vmatprep.subr.bf16.mxu0 0
  %672 = vmatpush1.bf16.msra.mxu0 %v494
  %673 = vmatprep.subr.bf16.mxu0 0
  %674 = vmatpush1.bf16.msra.mxu0 %v495
  %675 = vmatprep.subr.bf16.mxu0 0
  %676 = vmatpush1.bf16.msra.mxu0 %v496
  %677 = vmatprep.subr.bf16.mxu0 0
  %678 = vmatpush1.bf16.msra.mxu0 %v497
  %679 = vmatprep.subr.bf16.mxu0 0
  %680 = vmatpush1.bf16.msra.mxu0 %v498
  %681 = vmatprep.subr.bf16.mxu0 0
  %682 = vmatpush1.bf16.msra.mxu0 %v499
  %683 = vmatprep.subr.bf16.mxu0 0
  %684 = vmatpush1.bf16.msra.mxu0 %v500
  %685 = vmatprep.subr.bf16.mxu0 0
  %686 = vmatpush1.bf16.msra.mxu0 %v501
  %687 = vmatprep.subr.bf16.mxu0 0
  %688 = vmatpush1.bf16.msra.mxu0 %v502
  %689 = vmatprep.subr.bf16.mxu0 0
  %690 = vmatpush1.bf16.msra.mxu0 %v503
  %691 = vmatprep.subr.bf16.mxu0 0
  %692 = vmatpush1.bf16.msra.mxu0 %v504
  %693 = vmatprep.subr.bf16.mxu0 0
  %694 = vmatpush1.bf16.msra.mxu0 %v505
  %695 = vmatprep.subr.bf16.mxu0 0
  %696 = vmatpush1.bf16.msra.mxu0 %v506
  %697 = vmatprep.subr.bf16.mxu0 0
  %698 = vmatpush1.bf16.msra.mxu0 %v507
  %699 = vmatprep.subr.bf16.mxu0 0
  %700 = vmatpush1.bf16.msra.mxu0 %v508
  %701 = vmatprep.mubr.bf16.mxu0 %v194
  %702 = vmatmul.mubr.bf16.gmra.mrb[0].mxu0 %v193
  %v703 = vpop.f32.mrb[0].mxu0
  %v704 = vadd.f32 %v664, %v703
  %v705 = vpop.f32.mrb[0].mxu0
  %v706 = vpop.f32.mrb[0].mxu0
  %v707 = vpop.f32.mrb[0].mxu0
  %708 = vdwg.mxu0
  %709 = vmatprep.subr.bf16.mxu0 0
  %710 = vmatpush1.bf16.msra.mxu0 %v509
  %711 = vmatprep.subr.bf16.mxu0 0
  %712 = vmatpush1.bf16.msra.mxu0 %v510
  %713 = vmatprep.subr.bf16.mxu0 0
  %714 = vmatpush1.bf16.msra.mxu0 %v511
  %715 = vmatprep.subr.bf16.mxu0 0
  %716 = vmatpush1.bf16.msra.mxu0 %v512
  %717 = vmatprep.subr.bf16.mxu0 0
  %718 = vmatpush1.bf16.msra.mxu0 %v513
  %719 = vmatprep.subr.bf16.mxu0 0
  %720 = vmatpush1.bf16.msra.mxu0 %v514
  %721 = vmatprep.subr.bf16.mxu0 0
  %722 = vmatpush1.bf16.msra.mxu0 %v515
  %723 = vmatprep.subr.bf16.mxu0 0
  %724 = vmatpush1.bf16.msra.mxu0 %v516
  %725 = vmatprep.subr.bf16.mxu0 0
  %726 = vmatpush1.bf16.msra.mxu0 %v517
  %727 = vmatprep.subr.bf16.mxu0 0
  %728 = vmatpush1.bf16.msra.mxu0 %v518
  %729 = vmatprep.subr.bf16.mxu0 0
  %730 = vmatpush1.bf16.msra.mxu0 %v519
  %731 = vmatprep.subr.bf16.mxu0 0
  %732 = vmatpush1.bf16.msra.mxu0 %v520
  %733 = vmatprep.subr.bf16.mxu0 0
  %734 = vmatpush1.bf16.msra.mxu0 %v521
  %735 = vmatprep.subr.bf16.mxu0 0
  %736 = vmatpush1.bf16.msra.mxu0 %v522
  %737 = vmatprep.subr.bf16.mxu0 0
  %738 = vmatpush1.bf16.msra.mxu0 %v523
  %739 = vmatprep.subr.bf16.mxu0 0
  %740 = vmatpush1.bf16.msra.mxu0 %v524
  %741 = vmatprep.mubr.bf16.mxu0 %v196
  %742 = vmatmul.mubr.bf16.gmra.mrb[0].mxu0 %v195
  %v743 = vpop.f32.mrb[0].mxu0
  %v744 = vadd.f32 %v704, %v743
  %v745 = vpop.f32.mrb[0].mxu0
  %v746 = vpop.f32.mrb[0].mxu0
  %v747 = vpop.f32.mrb[0].mxu0
  %748 = vdwg.mxu0
  %v749 = vmax.f32 %v744, 0.0
  %v750 = vpack.c.bf16 %v749, %v749
  %v751 = vld [vmem:[%s4] sm:$0xf]
  %v752 = vld [vmem:[%s4 + $0x4] sm:$0xf]
  %v753 = vld [vmem:[%s4 + $0x8] sm:$0xf]
  %v754 = vld [vmem:[%s4 + $0xc] sm:$0xf]
  %v755 = vld [vmem:[%s4 + $0x10] sm:$0xf]
  %v756 = vld [vmem:[%s4 + $0x14] sm:$0xf]
  %v757 = vld [vmem:[%s4 + $0x18] sm:$0xf]
  %v758 = vld [vmem:[%s4 + $0x1c] sm:$0xf]
  %v759 = vld [vmem:[%s4 + $0x20] sm:$0xf]
  %v760 = vld [vmem:[%s4 + $0x24] sm:$0xf]
  %v761 = vld [vmem:[%s4 + $0x28] sm:$0xf]
  %v762 = vld [vmem:[%s4 + $0x2c] sm:$0xf]
  %v763 = vld [vmem:[%s4 + $0x30] sm:$0xf]
  %v764 = vld [vmem:[%s4 + $0x34] sm:$0xf]
  %v765 = vld [vmem:[%s4 + $0x38] sm:$0xf]
  %v766 = vld [vmem:[%s4 + $0x3c] sm:$0xf]
  %v767 = vld [vmem:[%s5] sm:$0x1]
  %v769 = vlaneseq
  %v770 = vshrl.u32 %v769, 7
  %v771 = vsub.s32 0, %v770
  %v772 = vrot.slane %v767, %v771
  %v790 = vunpack.c.l.b16 %v751
  %v791 = vunpack.c.l.b16 %v752
  %v792 = vunpack.c.l.b16 %v753
  %v793 = vunpack.c.l.b16 %v754
  %v794 = vunpack.c.l.b16 %v755
  %v795 = vunpack.c.l.b16 %v756
  %v796 = vunpack.c.l.b16 %v757
  %v797 = vunpack.c.l.b16 %v758
  %v798 = vunpack.c.l.b16 %v759
  %v799 = vunpack.c.l.b16 %v760
  %v800 = vunpack.c.l.b16 %v761
  %v801 = vunpack.c.l.b16 %v762
  %v802 = vunpack.c.l.b16 %v763
  %v803 = vunpack.c.l.b16 %v764
  %v804 = vunpack.c.l.b16 %v765
  %v805 = vunpack.c.l.b16 %v766
  %v806 = vpack.c.b16 %v791, %v790
  %v807 = vpack.c.b16 %v793, %v792
  %v808 = vpack.c.b16 %v795, %v794
  %v809 = vpack.c.b16 %v797, %v796
  %v810 = vpack.c.b16 %v799, %v798
  %v811 = vpack.c.b16 %v801, %v800
  %v812 = vpack.c.b16 %v803, %v802
  %v813 = vpack.c.b16 %v805, %v804
  %822 = vmatprep.subr.bf16.mxu0 0
  %823 = vmatpush1.bf16.msra.mxu0 %v806
  %824 = vmatprep.subr.bf16.mxu0 0
  %825 = vmatpush1.bf16.msra.mxu0 %v807
  %826 = vmatprep.subr.bf16.mxu0 0
  %827 = vmatpush1.bf16.msra.mxu0 %v808
  %828 = vmatprep.subr.bf16.mxu0 0
  %829 = vmatpush1.bf16.msra.mxu0 %v809
  %830 = vmatprep.subr.bf16.mxu0 0
  %831 = vmatpush1.bf16.msra.mxu0 %v810
  %832 = vmatprep.subr.bf16.mxu0 0
  %833 = vmatpush1.bf16.msra.mxu0 %v811
  %834 = vmatprep.subr.bf16.mxu0 0
  %835 = vmatpush1.bf16.msra.mxu0 %v812
  %836 = vmatprep.subr.bf16.mxu0 0
  %837 = vmatpush1.bf16.msra.mxu0 %v813
  %838 = vmatprep.subr.bf16.mxu0 0
  %839 = vmatpush1.bf16.msra.mxu0 0
  %840 = vmatprep.subr.bf16.mxu0 0
  %841 = vmatpush1.bf16.msra.mxu0 0
  %842 = vmatprep.subr.bf16.mxu0 0
  %843 = vmatpush1.bf16.msra.mxu0 0
  %844 = vmatprep.subr.bf16.mxu0 0
  %845 = vmatpush1.bf16.msra.mxu0 0
  %846 = vmatprep.subr.bf16.mxu0 0
  %847 = vmatpush1.bf16.msra.mxu0 0
  %848 = vmatprep.subr.bf16.mxu0 0
  %849 = vmatpush1.bf16.msra.mxu0 0
  %850 = vmatprep.subr.bf16.mxu0 0
  %851 = vmatpush1.bf16.msra.mxu0 0
  %852 = vmatprep.subr.bf16.mxu0 0
  %853 = vmatpush1.bf16.msra.mxu0 0
  %854 = vmatprep.mubr.bf16.mxu0 0
  %855 = vmatmul.mubr.bf16.gmra.mrb[0].mxu0 %v750
  %v856 = vpop.f32.mrb[0].mxu0
  %v857 = vadd.f32 %v772, %v856
  %v858 = vpop.f32.mrb[0].mxu0
  %v859 = vpop.f32.mrb[0].mxu0
  %v860 = vpop.f32.mrb[0].mxu0
  %861 = vdwg.mxu0
  %v862 = vmul.f32 %v857, 0.5
  %v863 = vmul.f32 %v862, 1.442695
  %v864 = vpow.pop %v863
  %v865 = vld [vmem:[%s1] sm:$0xff]
  %867 = vrot.lane.b32.xlu0 %v865, 32
  %v868 = vpop.permute.xlu0 %867
  %v870 = vmul.f32 %v864, %v868
  %872 = vrot.lane.b32.xlu0 %v870, 96
  %v873 = vpop.permute.xlu0 %872
  %v875 = vadd.f32 %v857, %v873
  %v876 = vpack.c.bf16 %v875, %v875
  %v877 = vld [vmem:[%s6] sm:$0xff]
  %v878 = vld [vmem:[%s6 + $0x8] sm:$0xff]
  %v879 = vld [vmem:[%s6 + $0x10] sm:$0xff]
  %v880 = vld [vmem:[%s6 + $0x18] sm:$0xff]
  %v881 = vld [vmem:[%s7] sm:$0x3]
  %v883 = vlaneseq
  %v884 = vshrl.u32 %v883, 7
  %v885 = vsub.s32 0, %v884
  %v886 = vrot.slane %v881, %v885
  %v887 = vlaneseq
  %v888 = vshrl.u32 %v887, 7
  %v889 = vsub.s32 1, %v888
  %v890 = vrot.slane %v881, %v889
  %v897 = vunpack.c.l.b16 %v877
  %v898 = vunpack.c.h.b16 %v877
  %v899 = vunpack.c.l.b16 %v878
  %v900 = vunpack.c.h.b16 %v878
  %v901 = vunpack.c.l.b16 %v879
  %v902 = vunpack.c.h.b16 %v879
  %v903 = vunpack.c.l.b16 %v880
  %v904 = vunpack.c.h.b16 %v880
  %v905 = vpack.c.b16 %v899, %v897
  %v906 = vpack.c.b16 %v900, %v898
  %v907 = vpack.c.b16 %v903, %v901
  %v908 = vpack.c.b16 %v904, %v902
  %vm913 = vcmask 261120
  %v915 = vsel %vm913, %v876, 0
  %917 = vmatprep.subr.bf16.mxu0 %v906
  %918 = vmatpush1.bf16.msra.mxu0 %v905
  %919 = vmatprep.subr.bf16.mxu0 %v908
  %920 = vmatpush1.bf16.msra.mxu0 %v907
  %921 = vmatprep.subr.bf16.mxu0 0
  %922 = vmatpush1.bf16.msra.mxu0 0
  %923 = vmatprep.subr.bf16.mxu0 0
  %924 = vmatpush1.bf16.msra.mxu0 0
  %925 = vmatprep.subr.bf16.mxu0 0
  %926 = vmatpush1.bf16.msra.mxu0 0
  %927 = vmatprep.subr.bf16.mxu0 0
  %928 = vmatpush1.bf16.msra.mxu0 0
  %929 = vmatprep.subr.bf16.mxu0 0
  %930 = vmatpush1.bf16.msra.mxu0 0
  %931 = vmatprep.subr.bf16.mxu0 0
  %932 = vmatpush1.bf16.msra.mxu0 0
  %933 = vmatprep.subr.bf16.mxu0 0
  %934 = vmatpush1.bf16.msra.mxu0 0
  %935 = vmatprep.subr.bf16.mxu0 0
  %936 = vmatpush1.bf16.msra.mxu0 0
  %937 = vmatprep.subr.bf16.mxu0 0
  %938 = vmatpush1.bf16.msra.mxu0 0
  %939 = vmatprep.subr.bf16.mxu0 0
  %940 = vmatpush1.bf16.msra.mxu0 0
  %941 = vmatprep.subr.bf16.mxu0 0
  %942 = vmatpush1.bf16.msra.mxu0 0
  %943 = vmatprep.subr.bf16.mxu0 0
  %944 = vmatpush1.bf16.msra.mxu0 0
  %945 = vmatprep.subr.bf16.mxu0 0
  %946 = vmatpush1.bf16.msra.mxu0 0
  %947 = vmatprep.subr.bf16.mxu0 0
  %948 = vmatpush1.bf16.msra.mxu0 0
  %949 = vmatprep.mubr.bf16.mxu0 0
  %950 = vmatmul.mubr.bf16.gmra.mrb[0].mxu0 %v915
  %v951 = vpop.f32.mrb[0].mxu0
  %v952 = vadd.f32 %v886, %v951
  %v953 = vpop.f32.mrb[0].mxu0
  %v954 = vadd.f32 %v890, %v953
  %v955 = vpop.f32.mrb[0].mxu0
  %v956 = vpop.f32.mrb[0].mxu0
  %957 = vdwg.mxu0
  %v958 = vmax.f32 %v952, 0.0
  %v959 = vpack.c.bf16 %v958, %v958
  %v960 = vld [vmem:[%s8] sm:$0xff]
  %v961 = vld [vmem:[%s8 + $0x8] sm:$0xff]
  %v962 = vld [vmem:[%s8 + $0x10] sm:$0xff]
  %v963 = vld [vmem:[%s8 + $0x18] sm:$0xff]
  %v964 = vld [vmem:[%s8 + $0x20] sm:$0xff]
  %v965 = vld [vmem:[%s8 + $0x28] sm:$0xff]
  %v966 = vld [vmem:[%s8 + $0x30] sm:$0xff]
  %v967 = vld [vmem:[%s8 + $0x38] sm:$0xff]
  %v968 = vld [vmem:[%s8 + $0x40] sm:$0xff]
  %v969 = vld [vmem:[%s8 + $0x48] sm:$0xff]
  %v970 = vld [vmem:[%s8 + $0x50] sm:$0xff]
  %v971 = vld [vmem:[%s8 + $0x58] sm:$0xff]
  %v972 = vld [vmem:[%s8 + $0x60] sm:$0xff]
  %v973 = vld [vmem:[%s8 + $0x68] sm:$0xff]
  %v974 = vld [vmem:[%s8 + $0x70] sm:$0xff]
  %v975 = vld [vmem:[%s8 + $0x78] sm:$0xff]
  %v976 = vld [vmem:[%s8 + $0x80] sm:$0xff]
  %v977 = vld [vmem:[%s8 + $0x88] sm:$0xff]
  %v978 = vld [vmem:[%s8 + $0x90] sm:$0xff]
  %v979 = vld [vmem:[%s8 + $0x98] sm:$0xff]
  %v980 = vld [vmem:[%s8 + $0xa0] sm:$0xff]
  %v981 = vld [vmem:[%s8 + $0xa8] sm:$0xff]
  %v982 = vld [vmem:[%s8 + $0xb0] sm:$0xff]
  %v983 = vld [vmem:[%s8 + $0xb8] sm:$0xff]
  %v984 = vld [vmem:[%s8 + $0xc0] sm:$0xff]
  %v985 = vld [vmem:[%s8 + $0xc8] sm:$0xff]
  %v986 = vld [vmem:[%s8 + $0xd0] sm:$0xff]
  %v987 = vld [vmem:[%s8 + $0xd8] sm:$0xff]
  %v988 = vld [vmem:[%s8 + $0xe0] sm:$0xff]
  %v989 = vld [vmem:[%s8 + $0xe8] sm:$0xff]
  %v990 = vld [vmem:[%s8 + $0xf0] sm:$0xff]
  %v991 = vld [vmem:[%s8 + $0xf8] sm:$0xff]
  %v992 = vld [vmem:[%s8 + $0x100] sm:$0xff]
  %v993 = vld [vmem:[%s8 + $0x108] sm:$0xff]
  %v994 = vld [vmem:[%s8 + $0x110] sm:$0xff]
  %v995 = vld [vmem:[%s8 + $0x118] sm:$0xff]
  %v996 = vld [vmem:[%s8 + $0x120] sm:$0xff]
  %v997 = vld [vmem:[%s8 + $0x128] sm:$0xff]
  %v998 = vld [vmem:[%s8 + $0x130] sm:$0xff]
  %v999 = vld [vmem:[%s8 + $0x138] sm:$0xff]
  %v1000 = vld [vmem:[%s8 + $0x140] sm:$0xff]
  %v1001 = vld [vmem:[%s8 + $0x148] sm:$0xff]
  %v1002 = vld [vmem:[%s8 + $0x150] sm:$0xff]
  %v1003 = vld [vmem:[%s8 + $0x158] sm:$0xff]
  %v1004 = vld [vmem:[%s8 + $0x160] sm:$0xff]
  %v1005 = vld [vmem:[%s8 + $0x168] sm:$0xff]
  %v1006 = vld [vmem:[%s8 + $0x170] sm:$0xff]
  %v1007 = vld [vmem:[%s8 + $0x178] sm:$0xff]
  %v1008 = vld [vmem:[%s8 + $0x180] sm:$0xff]
  %v1009 = vld [vmem:[%s8 + $0x188] sm:$0xff]
  %v1010 = vld [vmem:[%s8 + $0x190] sm:$0xff]
  %v1011 = vld [vmem:[%s8 + $0x198] sm:$0xff]
  %v1012 = vld [vmem:[%s8 + $0x1a0] sm:$0xff]
  %v1013 = vld [vmem:[%s8 + $0x1a8] sm:$0xff]
  %v1014 = vld [vmem:[%s8 + $0x1b0] sm:$0xff]
  %v1015 = vld [vmem:[%s8 + $0x1b8] sm:$0xff]
  %v1016 = vld [vmem:[%s8 + $0x1c0] sm:$0xff]
  %v1017 = vld [vmem:[%s8 + $0x1c8] sm:$0xff]
  %v1018 = vld [vmem:[%s8 + $0x1d0] sm:$0xff]
  %v1019 = vld [vmem:[%s8 + $0x1d8] sm:$0xff]
  %v1020 = vld [vmem:[%s8 + $0x1e0] sm:$0xff]
  %v1021 = vld [vmem:[%s8 + $0x1e8] sm:$0xff]
  %v1022 = vld [vmem:[%s8 + $0x1f0] sm:$0xff]
  %v1023 = vld [vmem:[%s8 + $0x1f8] sm:$0xff]
  %v1024 = vld [vmem:[%s9] sm:$0xff]
  %v1026 = vlaneseq
  %v1027 = vshrl.u32 %v1026, 7
  %v1028 = vsub.s32 0, %v1027
  %v1029 = vrot.slane %v1024, %v1028
  %v1030 = vlaneseq
  %v1031 = vshrl.u32 %v1030, 7
  %v1032 = vsub.s32 1, %v1031
  %v1033 = vrot.slane %v1024, %v1032
  %v1034 = vlaneseq
  %v1035 = vshrl.u32 %v1034, 7
  %v1036 = vsub.s32 2, %v1035
  %v1037 = vrot.slane %v1024, %v1036
  %v1038 = vlaneseq
  %v1039 = vshrl.u32 %v1038, 7
  %v1040 = vsub.s32 3, %v1039
  %v1041 = vrot.slane %v1024, %v1040
  %v1042 = vlaneseq
  %v1043 = vshrl.u32 %v1042, 7
  %v1044 = vsub.s32 4, %v1043
  %v1045 = vrot.slane %v1024, %v1044
  %v1046 = vlaneseq
  %v1047 = vshrl.u32 %v1046, 7
  %v1048 = vsub.s32 5, %v1047
  %v1049 = vrot.slane %v1024, %v1048
  %v1050 = vlaneseq
  %v1051 = vshrl.u32 %v1050, 7
  %v1052 = vsub.s32 6, %v1051
  %v1053 = vrot.slane %v1024, %v1052
  %v1054 = vlaneseq
  %v1055 = vshrl.u32 %v1054, 7
  %v1056 = vsub.s32 7, %v1055
  %v1057 = vrot.slane %v1024, %v1056
  %v1130 = vunpack.c.l.b16 %v960
  %v1131 = vunpack.c.h.b16 %v960
  %v1132 = vunpack.c.l.b16 %v961
  %v1133 = vunpack.c.h.b16 %v961
  %v1134 = vunpack.c.l.b16 %v962
  %v1135 = vunpack.c.h.b16 %v962
  %v1136 = vunpack.c.l.b16 %v963
  %v1137 = vunpack.c.h.b16 %v963
  %v1138 = vunpack.c.l.b16 %v964
  %v1139 = vunpack.c.h.b16 %v964
  %v1140 = vunpack.c.l.b16 %v965
  %v1141 = vunpack.c.h.b16 %v965
  %v1142 = vunpack.c.l.b16 %v966
  %v1143 = vunpack.c.h.b16 %v966
  %v1144 = vunpack.c.l.b16 %v967
  %v1145 = vunpack.c.h.b16 %v967
  %v1146 = vunpack.c.l.b16 %v968
  %v1147 = vunpack.c.h.b16 %v968
  %v1148 = vunpack.c.l.b16 %v969
  %v1149 = vunpack.c.h.b16 %v969
  %v1150 = vunpack.c.l.b16 %v970
  %v1151 = vunpack.c.h.b16 %v970
  %v1152 = vunpack.c.l.b16 %v971
  %v1153 = vunpack.c.h.b16 %v971
  %v1154 = vunpack.c.l.b16 %v972
  %v1155 = vunpack.c.h.b16 %v972
  %v1156 = vunpack.c.l.b16 %v973
  %v1157 = vunpack.c.h.b16 %v973
  %v1158 = vunpack.c.l.b16 %v974
  %v1159 = vunpack.c.h.b16 %v974
  %v1160 = vunpack.c.l.b16 %v975
  %v1161 = vunpack.c.h.b16 %v975
  %v1162 = vunpack.c.l.b16 %v976
  %v1163 = vunpack.c.h.b16 %v976
  %v1164 = vunpack.c.l.b16 %v977
  %v1165 = vunpack.c.h.b16 %v977
  %v1166 = vunpack.c.l.b16 %v978
  %v1167 = vunpack.c.h.b16 %v978
  %v1168 = vunpack.c.l.b16 %v979
  %v1169 = vunpack.c.h.b16 %v979
  %v1170 = vunpack.c.l.b16 %v980
  %v1171 = vunpack.c.h.b16 %v980
  %v1172 = vunpack.c.l.b16 %v981
  %v1173 = vunpack.c.h.b16 %v981
  %v1174 = vunpack.c.l.b16 %v982
  %v1175 = vunpack.c.h.b16 %v982
  %v1176 = vunpack.c.l.b16 %v983
  %v1177 = vunpack.c.h.b16 %v983
  %v1178 = vunpack.c.l.b16 %v984
  %v1179 = vunpack.c.h.b16 %v984
  %v1180 = vunpack.c.l.b16 %v985
  %v1181 = vunpack.c.h.b16 %v985
  %v1182 = vunpack.c.l.b16 %v986
  %v1183 = vunpack.c.h.b16 %v986
  %v1184 = vunpack.c.l.b16 %v987
  %v1185 = vunpack.c.h.b16 %v987
  %v1186 = vunpack.c.l.b16 %v988
  %v1187 = vunpack.c.h.b16 %v988
  %v1188 = vunpack.c.l.b16 %v989
  %v1189 = vunpack.c.h.b16 %v989
  %v1190 = vunpack.c.l.b16 %v990
  %v1191 = vunpack.c.h.b16 %v990
  %v1192 = vunpack.c.l.b16 %v991
  %v1193 = vunpack.c.h.b16 %v991
  %v1194 = vunpack.c.l.b16 %v992
  %v1195 = vunpack.c.h.b16 %v992
  %v1196 = vunpack.c.l.b16 %v993
  %v1197 = vunpack.c.h.b16 %v993
  %v1198 = vunpack.c.l.b16 %v994
  %v1199 = vunpack.c.h.b16 %v994
  %v1200 = vunpack.c.l.b16 %v995
  %v1201 = vunpack.c.h.b16 %v995
  %v1202 = vunpack.c.l.b16 %v996
  %v1203 = vunpack.c.h.b16 %v996
  %v1204 = vunpack.c.l.b16 %v997
  %v1205 = vunpack.c.h.b16 %v997
  %v1206 = vunpack.c.l.b16 %v998
  %v1207 = vunpack.c.h.b16 %v998
  %v1208 = vunpack.c.l.b16 %v999
  %v1209 = vunpack.c.h.b16 %v999
  %v1210 = vunpack.c.l.b16 %v1000
  %v1211 = vunpack.c.h.b16 %v1000
  %v1212 = vunpack.c.l.b16 %v1001
  %v1213 = vunpack.c.h.b16 %v1001
  %v1214 = vunpack.c.l.b16 %v1002
  %v1215 = vunpack.c.h.b16 %v1002
  %v1216 = vunpack.c.l.b16 %v1003
  %v1217 = vunpack.c.h.b16 %v1003
  %v1218 = vunpack.c.l.b16 %v1004
  %v1219 = vunpack.c.h.b16 %v1004
  %v1220 = vunpack.c.l.b16 %v1005
  %v1221 = vunpack.c.h.b16 %v1005
  %v1222 = vunpack.c.l.b16 %v1006
  %v1223 = vunpack.c.h.b16 %v1006
  %v1224 = vunpack.c.l.b16 %v1007
  %v1225 = vunpack.c.h.b16 %v1007
  %v1226 = vunpack.c.l.b16 %v1008
  %v1227 = vunpack.c.h.b16 %v1008
  %v1228 = vunpack.c.l.b16 %v1009
  %v1229 = vunpack.c.h.b16 %v1009
  %v1230 = vunpack.c.l.b16 %v1010
  %v1231 = vunpack.c.h.b16 %v1010
  %v1232 = vunpack.c.l.b16 %v1011
  %v1233 = vunpack.c.h.b16 %v1011
  %v1234 = vunpack.c.l.b16 %v1012
  %v1235 = vunpack.c.h.b16 %v1012
  %v1236 = vunpack.c.l.b16 %v1013
  %v1237 = vunpack.c.h.b16 %v1013
  %v1238 = vunpack.c.l.b16 %v1014
  %v1239 = vunpack.c.h.b16 %v1014
  %v1240 = vunpack.c.l.b16 %v1015
  %v1241 = vunpack.c.h.b16 %v1015
  %v1242 = vunpack.c.l.b16 %v1016
  %v1243 = vunpack.c.h.b16 %v1016
  %v1244 = vunpack.c.l.b16 %v1017
  %v1245 = vunpack.c.h.b16 %v1017
  %v1246 = vunpack.c.l.b16 %v1018
  %v1247 = vunpack.c.h.b16 %v1018
  %v1248 = vunpack.c.l.b16 %v1019
  %v1249 = vunpack.c.h.b16 %v1019
  %v1250 = vunpack.c.l.b16 %v1020
  %v1251 = vunpack.c.h.b16 %v1020
  %v1252 = vunpack.c.l.b16 %v1021
  %v1253 = vunpack.c.h.b16 %v1021
  %v1254 = vunpack.c.l.b16 %v1022
  %v1255 = vunpack.c.h.b16 %v1022
  %v1256 = vunpack.c.l.b16 %v1023
  %v1257 = vunpack.c.h.b16 %v1023
  %v1258 = vpack.c.b16 %v1138, %v1130
  %v1259 = vpack.c.b16 %v1139, %v1131
  %v1260 = vpack.c.b16 %v1140, %v1132
  %v1261 = vpack.c.b16 %v1141, %v1133
  %v1262 = vpack.c.b16 %v1142, %v1134
  %v1263 = vpack.c.b16 %v1143, %v1135
  %v1264 = vpack.c.b16 %v1144, %v1136
  %v1265 = vpack.c.b16 %v1145, %v1137
  %v1266 = vpack.c.b16 %v1154, %v1146
  %v1267 = vpack.c.b16 %v1155, %v1147
  %v1268 = vpack.c.b16 %v1156, %v1148
  %v1269 = vpack.c.b16 %v1157, %v1149
  %v1270 = vpack.c.b16 %v1158, %v1150
  %v1271 = vpack.c.b16 %v1159, %v1151
  %v1272 = vpack.c.b16 %v1160, %v1152
  %v1273 = vpack.c.b16 %v1161, %v1153
  %v1274 = vpack.c.b16 %v1170, %v1162
  %v1275 = vpack.c.b16 %v1171, %v1163
  %v1276 = vpack.c.b16 %v1172, %v1164
  %v1277 = vpack.c.b16 %v1173, %v1165
  %v1278 = vpack.c.b16 %v1174, %v1166
  %v1279 = vpack.c.b16 %v1175, %v1167
  %v1280 = vpack.c.b16 %v1176, %v1168
  %v1281 = vpack.c.b16 %v1177, %v1169
  %v1282 = vpack.c.b16 %v1186, %v1178
  %v1283 = vpack.c.b16 %v1187, %v1179
  %v1284 = vpack.c.b16 %v1188, %v1180
  %v1285 = vpack.c.b16 %v1189, %v1181
  %v1286 = vpack.c.b16 %v1190, %v1182
  %v1287 = vpack.c.b16 %v1191, %v1183
  %v1288 = vpack.c.b16 %v1192, %v1184
  %v1289 = vpack.c.b16 %v1193, %v1185
  %v1290 = vpack.c.b16 %v1202, %v1194
  %v1291 = vpack.c.b16 %v1203, %v1195
  %v1292 = vpack.c.b16 %v1204, %v1196
  %v1293 = vpack.c.b16 %v1205, %v1197
  %v1294 = vpack.c.b16 %v1206, %v1198
  %v1295 = vpack.c.b16 %v1207, %v1199
  %v1296 = vpack.c.b16 %v1208, %v1200
  %v1297 = vpack.c.b16 %v1209, %v1201
  %v1298 = vpack.c.b16 %v1218, %v1210
  %v1299 = vpack.c.b16 %v1219, %v1211
  %v1300 = vpack.c.b16 %v1220, %v1212
  %v1301 = vpack.c.b16 %v1221, %v1213
  %v1302 = vpack.c.b16 %v1222, %v1214
  %v1303 = vpack.c.b16 %v1223, %v1215
  %v1304 = vpack.c.b16 %v1224, %v1216
  %v1305 = vpack.c.b16 %v1225, %v1217
  %v1306 = vpack.c.b16 %v1234, %v1226
  %v1307 = vpack.c.b16 %v1235, %v1227
  %v1308 = vpack.c.b16 %v1236, %v1228
  %v1309 = vpack.c.b16 %v1237, %v1229
  %v1310 = vpack.c.b16 %v1238, %v1230
  %v1311 = vpack.c.b16 %v1239, %v1231
  %v1312 = vpack.c.b16 %v1240, %v1232
  %v1313 = vpack.c.b16 %v1241, %v1233
  %v1314 = vpack.c.b16 %v1250, %v1242
  %v1315 = vpack.c.b16 %v1251, %v1243
  %v1316 = vpack.c.b16 %v1252, %v1244
  %v1317 = vpack.c.b16 %v1253, %v1245
  %v1318 = vpack.c.b16 %v1254, %v1246
  %v1319 = vpack.c.b16 %v1255, %v1247
  %v1320 = vpack.c.b16 %v1256, %v1248
  %v1321 = vpack.c.b16 %v1257, %v1249
  %1386 = vmatprep.subr.bf16.mxu0 %v1259
  %1387 = vmatpush1.bf16.msra.mxu0 %v1258
  %1388 = vmatprep.subr.bf16.mxu0 %v1267
  %1389 = vmatpush1.bf16.msra.mxu0 %v1266
  %1390 = vmatprep.subr.bf16.mxu0 %v1275
  %1391 = vmatpush1.bf16.msra.mxu0 %v1274
  %1392 = vmatprep.subr.bf16.mxu0 %v1283
  %1393 = vmatpush1.bf16.msra.mxu0 %v1282
  %1394 = vmatprep.subr.bf16.mxu0 %v1291
  %1395 = vmatpush1.bf16.msra.mxu0 %v1290
  %1396 = vmatprep.subr.bf16.mxu0 %v1299
  %1397 = vmatpush1.bf16.msra.mxu0 %v1298
  %1398 = vmatprep.subr.bf16.mxu0 %v1307
  %1399 = vmatpush1.bf16.msra.mxu0 %v1306
  %1400 = vmatprep.subr.bf16.mxu0 %v1315
  %1401 = vmatpush1.bf16.msra.mxu0 %v1314
  %1402 = vmatprep.subr.bf16.mxu0 0
  %1403 = vmatpush1.bf16.msra.mxu0 0
  %1404 = vmatprep.subr.bf16.mxu0 0
  %1405 = vmatpush1.bf16.msra.mxu0 0
  %1406 = vmatprep.subr.bf16.mxu0 0
  %1407 = vmatpush1.bf16.msra.mxu0 0
  %1408 = vmatprep.subr.bf16.mxu0 0
  %1409 = vmatpush1.bf16.msra.mxu0 0
  %1410 = vmatprep.subr.bf16.mxu0 0
  %1411 = vmatpush1.bf16.msra.mxu0 0
  %1412 = vmatprep.subr.bf16.mxu0 0
  %1413 = vmatpush1.bf16.msra.mxu0 0
  %1414 = vmatprep.subr.bf16.mxu0 0
  %1415 = vmatpush1.bf16.msra.mxu0 0
  %1416 = vmatprep.subr.bf16.mxu0 0
  %1417 = vmatpush1.bf16.msra.mxu0 0
  %1418 = vmatprep.mubr.bf16.mxu0 0
  %1419 = vmatmul.mubr.bf16.gmra.mrb[0].mxu0 %v959
  %v1420 = vpop.f32.mrb[0].mxu0
  %v1421 = vadd.f32 %v1029, %v1420
  %v1422 = vpop.f32.mrb[0].mxu0
  %v1423 = vadd.f32 %v1033, %v1422
  %v1424 = vpop.f32.mrb[0].mxu0
  %v1425 = vpop.f32.mrb[0].mxu0
  %1426 = vdwg.mxu0
  %1427 = vmatprep.subr.bf16.mxu0 %v1261
  %1428 = vmatpush1.bf16.msra.mxu0 %v1260
  %1429 = vmatprep.subr.bf16.mxu0 %v1269
  %1430 = vmatpush1.bf16.msra.mxu0 %v1268
  %1431 = vmatprep.subr.bf16.mxu0 %v1277
  %1432 = vmatpush1.bf16.msra.mxu0 %v1276
  %1433 = vmatprep.subr.bf16.mxu0 %v1285
  %1434 = vmatpush1.bf16.msra.mxu0 %v1284
  %1435 = vmatprep.subr.bf16.mxu0 %v1293
  %1436 = vmatpush1.bf16.msra.mxu0 %v1292
  %1437 = vmatprep.subr.bf16.mxu0 %v1301
  %1438 = vmatpush1.bf16.msra.mxu0 %v1300
  %1439 = vmatprep.subr.bf16.mxu0 %v1309
  %1440 = vmatpush1.bf16.msra.mxu0 %v1308
  %1441 = vmatprep.subr.bf16.mxu0 %v1317
  %1442 = vmatpush1.bf16.msra.mxu0 %v1316
  %1443 = vmatprep.subr.bf16.mxu0 0
  %1444 = vmatpush1.bf16.msra.mxu0 0
  %1445 = vmatprep.subr.bf16.mxu0 0
  %1446 = vmatpush1.bf16.msra.mxu0 0
  %1447 = vmatprep.subr.bf16.mxu0 0
  %1448 = vmatpush1.bf16.msra.mxu0 0
  %1449 = vmatprep.subr.bf16.mxu0 0
  %1450 = vmatpush1.bf16.msra.mxu0 0
  %1451 = vmatprep.subr.bf16.mxu0 0
  %1452 = vmatpush1.bf16.msra.mxu0 0
  %1453 = vmatprep.subr.bf16.mxu0 0
  %1454 = vmatpush1.bf16.msra.mxu0 0
  %1455 = vmatprep.subr.bf16.mxu0 0
  %1456 = vmatpush1.bf16.msra.mxu0 0
  %1457 = vmatprep.subr.bf16.mxu0 0
  %1458 = vmatpush1.bf16.msra.mxu0 0
  %1459 = vmatprep.mubr.bf16.mxu0 0
  %1460 = vmatmul.mubr.bf16.gmra.mrb[0].mxu0 %v959
  %v1461 = vpop.f32.mrb[0].mxu0
  %v1462 = vadd.f32 %v1037, %v1461
  %v1463 = vpop.f32.mrb[0].mxu0
  %v1464 = vadd.f32 %v1041, %v1463
  %v1465 = vpop.f32.mrb[0].mxu0
  %v1466 = vpop.f32.mrb[0].mxu0
  %1467 = vdwg.mxu0
  %1468 = vmatprep.subr.bf16.mxu0 %v1263
  %1469 = vmatpush1.bf16.msra.mxu0 %v1262
  %1470 = vmatprep.subr.bf16.mxu0 %v1271
  %1471 = vmatpush1.bf16.msra.mxu0 %v1270
  %1472 = vmatprep.subr.bf16.mxu0 %v1279
  %1473 = vmatpush1.bf16.msra.mxu0 %v1278
  %1474 = vmatprep.subr.bf16.mxu0 %v1287
  %1475 = vmatpush1.bf16.msra.mxu0 %v1286
  %1476 = vmatprep.subr.bf16.mxu0 %v1295
  %1477 = vmatpush1.bf16.msra.mxu0 %v1294
  %1478 = vmatprep.subr.bf16.mxu0 %v1303
  %1479 = vmatpush1.bf16.msra.mxu0 %v1302
  %1480 = vmatprep.subr.bf16.mxu0 %v1311
  %1481 = vmatpush1.bf16.msra.mxu0 %v1310
  %1482 = vmatprep.subr.bf16.mxu0 %v1319
  %1483 = vmatpush1.bf16.msra.mxu0 %v1318
  %1484 = vmatprep.subr.bf16.mxu0 0
  %1485 = vmatpush1.bf16.msra.mxu0 0
  %1486 = vmatprep.subr.bf16.mxu0 0
  %1487 = vmatpush1.bf16.msra.mxu0 0
  %1488 = vmatprep.subr.bf16.mxu0 0
  %1489 = vmatpush1.bf16.msra.mxu0 0
  %1490 = vmatprep.subr.bf16.mxu0 0
  %1491 = vmatpush1.bf16.msra.mxu0 0
  %1492 = vmatprep.subr.bf16.mxu0 0
  %1493 = vmatpush1.bf16.msra.mxu0 0
  %1494 = vmatprep.subr.bf16.mxu0 0
  %1495 = vmatpush1.bf16.msra.mxu0 0
  %1496 = vmatprep.subr.bf16.mxu0 0
  %1497 = vmatpush1.bf16.msra.mxu0 0
  %1498 = vmatprep.subr.bf16.mxu0 0
  %1499 = vmatpush1.bf16.msra.mxu0 0
  %1500 = vmatprep.mubr.bf16.mxu0 0
  %1501 = vmatmul.mubr.bf16.gmra.mrb[0].mxu0 %v959
  %v1502 = vpop.f32.mrb[0].mxu0
  %v1503 = vadd.f32 %v1045, %v1502
  %v1504 = vpop.f32.mrb[0].mxu0
  %v1505 = vadd.f32 %v1049, %v1504
  %v1506 = vpop.f32.mrb[0].mxu0
  %v1507 = vpop.f32.mrb[0].mxu0
  %1508 = vdwg.mxu0
  %1509 = vmatprep.subr.bf16.mxu0 %v1265
  %1510 = vmatpush1.bf16.msra.mxu0 %v1264
  %1511 = vmatprep.subr.bf16.mxu0 %v1273
  %1512 = vmatpush1.bf16.msra.mxu0 %v1272
  %1513 = vmatprep.subr.bf16.mxu0 %v1281
  %1514 = vmatpush1.bf16.msra.mxu0 %v1280
  %1515 = vmatprep.subr.bf16.mxu0 %v1289
  %1516 = vmatpush1.bf16.msra.mxu0 %v1288
  %1517 = vmatprep.subr.bf16.mxu0 %v1297
  %1518 = vmatpush1.bf16.msra.mxu0 %v1296
  %1519 = vmatprep.subr.bf16.mxu0 %v1305
  %1520 = vmatpush1.bf16.msra.mxu0 %v1304
  %1521 = vmatprep.subr.bf16.mxu0 %v1313
  %1522 = vmatpush1.bf16.msra.mxu0 %v1312
  %1523 = vmatprep.subr.bf16.mxu0 %v1321
  %1524 = vmatpush1.bf16.msra.mxu0 %v1320
  %1525 = vmatprep.subr.bf16.mxu0 0
  %1526 = vmatpush1.bf16.msra.mxu0 0
  %1527 = vmatprep.subr.bf16.mxu0 0
  %1528 = vmatpush1.bf16.msra.mxu0 0
  %1529 = vmatprep.subr.bf16.mxu0 0
  %1530 = vmatpush1.bf16.msra.mxu0 0
  %1531 = vmatprep.subr.bf16.mxu0 0
  %1532 = vmatpush1.bf16.msra.mxu0 0
  %1533 = vmatprep.subr.bf16.mxu0 0
  %1534 = vmatpush1.bf16.msra.mxu0 0
  %1535 = vmatprep.subr.bf16.mxu0 0
  %1536 = vmatpush1.bf16.msra.mxu0 0
  %1537 = vmatprep.subr.bf16.mxu0 0
  %1538 = vmatpush1.bf16.msra.mxu0 0
  %1539 = vmatprep.subr.bf16.mxu0 0
  %1540 = vmatpush1.bf16.msra.mxu0 0
  %1541 = vmatprep.mubr.bf16.mxu0 0
  %1542 = vmatmul.mubr.bf16.gmra.mrb[0].mxu0 %v959
  %v1543 = vpop.f32.mrb[0].mxu0
  %v1544 = vadd.f32 %v1053, %v1543
  %v1545 = vpop.f32.mrb[0].mxu0
  %v1546 = vadd.f32 %v1057, %v1545
  %v1547 = vpop.f32.mrb[0].mxu0
  %v1548 = vpop.f32.mrb[0].mxu0
  %1549 = vdwg.mxu0
  %v1550 = vmul.f32 %v1421, 0.5
  %v1551 = vmul.f32 %v1423, 0.5
  %v1552 = vmul.f32 %v1462, 0.5
  %v1553 = vmul.f32 %v1464, 0.5
  %v1554 = vmul.f32 %v1503, 0.5
  %v1555 = vmul.f32 %v1505, 0.5
  %v1556 = vmul.f32 %v1544, 0.5
  %v1557 = vmul.f32 %v1546, 0.5
  %v1558 = vtanh.pop %v1550
  %v1559 = vtanh.pop %v1551
  %v1560 = vtanh.pop %v1552
  %v1561 = vtanh.pop %v1553
  %v1562 = vtanh.pop %v1554
  %v1563 = vtanh.pop %v1555
  %v1564 = vtanh.pop %v1556
  %v1565 = vtanh.pop %v1557
  %v1566 = vadd.f32 %v1558, 1.0
  %v1567 = vadd.f32 %v1559, 1.0
  %v1568 = vadd.f32 %v1560, 1.0
  %v1569 = vadd.f32 %v1561, 1.0
  %v1570 = vadd.f32 %v1562, 1.0
  %v1571 = vadd.f32 %v1563, 1.0
  %v1572 = vadd.f32 %v1564, 1.0
  %v1573 = vadd.f32 %v1565, 1.0
  %v1574 = vmul.f32 %v1566, 0.5
  %v1575 = vmul.f32 %v1567, 0.5
  %v1576 = vmul.f32 %v1568, 0.5
  %v1577 = vmul.f32 %v1569, 0.5
  %v1578 = vmul.f32 %v1570, 0.5
  %v1579 = vmul.f32 %v1571, 0.5
  %v1580 = vmul.f32 %v1572, 0.5
  %v1581 = vmul.f32 %v1573, 0.5
  %vm1582 = vcmask 523264
  %1583 = vst.msk [vmem:[%s10] sm:$0xff] %vm1582, %v857
  %1585 = vrot.lane.b32.xlu0 %v954, 64
  %v1586 = vpop.permute.xlu0 %1585
  %vm1588 = vcmask 1048064
  %1589 = vst.msk [vmem:[%s10] sm:$0xff] %vm1588, %v1586
  %v1590 = vpack.c.bf16 %v1574, %v1574
  %v1591 = vpack.c.bf16 %v1575, %v1575
  %v1592 = vpack.c.bf16 %v1576, %v1576
  %v1593 = vpack.c.bf16 %v1577, %v1577
  %v1594 = vpack.c.bf16 %v1578, %v1578
  %v1595 = vpack.c.bf16 %v1579, %v1579
  %v1596 = vpack.c.bf16 %v1580, %v1580
  %v1597 = vpack.c.bf16 %v1581, %v1581
  %v1606 = vunpack.c.l.b16 %v1590
  %v1607 = vunpack.c.l.b16 %v1591
  %v1608 = vunpack.c.l.b16 %v1592
  %v1609 = vunpack.c.l.b16 %v1593
  %v1610 = vunpack.c.l.b16 %v1594
  %v1611 = vunpack.c.l.b16 %v1595
  %v1612 = vunpack.c.l.b16 %v1596
  %v1613 = vunpack.c.l.b16 %v1597
  %v1614 = vpack.c.b16 %v1607, %v1606
  %v1615 = vpack.c.b16 %v1609, %v1608
  %v1616 = vpack.c.b16 %v1611, %v1610
  %v1617 = vpack.c.b16 %v1613, %v1612
  %1622 = vst [vmem:[%s11] sm:$0xff] %v1614
  %1623 = vst [vmem:[%s11 + $0x8] sm:$0xff] %v1615
  %1624 = vst [vmem:[%s11 + $0x10] sm:$0xff] %v1616
  %1625 = vst [vmem:[%s11 + $0x18] sm:$0xff] %v1617
  // Predicated region
  $region42: #{fwd.1} parent=0 // pred_check
    _
  $region43: #{fwd.1} parent=0 // pred_check_branch
    %1627 = sbr.rel (0) target = $region45
  $region44: #{fwd.1} parent=0 // pred_region
    _
  $region45: #{fwd.1} parent=0 // pred_fallthru
    _
  // Predicated region
  $region46: #{fwd.1} parent=0 // pred_check
    _
  $region47: #{fwd.1} parent=0 // pred_check_branch
    %1629 = sbr.rel (0) target = $region49
  $region48: #{fwd.1} parent=0 // pred_region
    _
  $region49: #{fwd.1} parent=0 // pred_fallthru
    _
  // Predicated region
  $region50: #{fwd.1} parent=0 // pred_check
    _
  $region51: #{fwd.1} parent=0 // pred_check_branch
    %1631 = sbr.rel (0) target = $region53
  $region52: #{fwd.1} parent=0 // pred_region
    _
  $region53: #{fwd.1} parent=0 // pred_fallthru
    _
  // Predicated region
  $region54: #{fwd.1} parent=0 // pred_check
    _
  $region55: #{fwd.1} parent=0 // pred_check_branch
    %1633 = sbr.rel (0) target = $region57
  $region56: #{fwd.1} parent=0 // pred_region
    _
  $region57: #{fwd.1} parent=0 // pred_fallthru
    _

</llo_original>
